<compile_context>
chip_gen: v5e
topology: v5e:2x2
jax: 0.10.0
libtpu: 0.0.40
codegen_flags: <defaults>
</compile_context>

<pallas_src>
import math
import functools

import jax
import jax.numpy as jnp
from jax.experimental import pallas as pl
from jax.experimental.pallas import tpu as pltpu

# Explicit scoped-VMEM budget (> v5e's 16 MiB default; safe on v6e/v7x).
VMEM_LIMIT = 32 * 1024 * 1024
LN_EPS = 1e-5


def _pick_tile(dim, target):
    """Largest multiple-of-8 divisor of `dim` that is <= target (else dim)."""
    if dim <= target:
        return dim
    for t in range(target, 7, -1):
        if dim % t == 0 and t % 8 == 0:
            return t
    return dim


# ----------------------------------------------------------------------------
# In-kernel helpers
# ----------------------------------------------------------------------------
def _layernorm(x, gamma, beta, eps):
    # x: (S, D) f32, gamma/beta: (1, D) f32
    mean = jnp.mean(x, axis=-1, keepdims=True)
    var = jnp.mean((x - mean) ** 2, axis=-1, keepdims=True)
    return (x - mean) * jax.lax.rsqrt(var + eps) * gamma + beta


# ----------------------------------------------------------------------------
# Kernel 1: tiled  X @ W + b  (patch-embedding "conv")
# ----------------------------------------------------------------------------
def matmul_bias_kernel(x_ref, w_ref, b_ref, o_ref, acc_ref):
    @pl.when(pl.program_id(2) == 0)
    def _():
        acc_ref[...] = jnp.zeros_like(acc_ref)

    acc_ref[...] += jnp.dot(
        x_ref[...].astype(jnp.bfloat16), w_ref[...],
        preferred_element_type=jnp.float32,
    )

    @pl.when(pl.program_id(2) == pl.num_programs(2) - 1)
    def _():
        o_ref[...] = acc_ref[...] + b_ref[...]


def matmul_bias(x, w, b):
    """x:(M,K) f32, w:(K,N) bf16, b:(1,N) f32 -> (M,N) f32."""
    M, K = x.shape
    N = w.shape[1]
    tm, tn, tk = _pick_tile(M, 256), _pick_tile(N, 256), _pick_tile(K, 512)
    return pl.pallas_call(
        matmul_bias_kernel,
        grid=(M // tm, N // tn, K // tk),
        in_specs=[
            pl.BlockSpec((tm, tk), lambda i, j, k: (i, k)),
            pl.BlockSpec((tk, tn), lambda i, j, k: (k, j)),
            pl.BlockSpec((1, tn), lambda i, j, k: (0, j)),
        ],
        out_specs=pl.BlockSpec((tm, tn), lambda i, j, k: (i, j)),
        out_shape=jax.ShapeDtypeStruct((M, N), jnp.float32),
        scratch_shapes=[pltpu.VMEM((tm, tn), jnp.float32)],
        compiler_params=pltpu.CompilerParams(
            dimension_semantics=("parallel", "parallel", "arbitrary"),
            vmem_limit_bytes=VMEM_LIMIT,
        ),
    )(x, w, b)


# ----------------------------------------------------------------------------
# Kernel 2: LayerNorm1 + fused QKV projection (row-tiled over all tokens)
# ----------------------------------------------------------------------------
def ln_qkv_kernel(x_ref, vec_ref, wqkv_ref, bqkv_ref, o_ref):
    x = x_ref[...]                              # (tr, D) f32
    g = vec_ref[0:1, :]
    b = vec_ref[1:2, :]
    h = _layernorm(x, g, b, LN_EPS).astype(jnp.bfloat16)
    qkv = jnp.dot(h, wqkv_ref[...], preferred_element_type=jnp.float32)
    o_ref[...] = (qkv + bqkv_ref[...]).astype(o_ref.dtype)


def ln_qkv(x_flat, vec_a, wqkv, bqkv):
    R, D = x_flat.shape
    N3 = wqkv.shape[1]
    tr = _pick_tile(R, 512)
    return pl.pallas_call(
        ln_qkv_kernel,
        grid=(R // tr,),
        in_specs=[
            pl.BlockSpec((tr, D), lambda i: (i, 0)),
            pl.BlockSpec(vec_a.shape, lambda i: (0, 0)),
            pl.BlockSpec((D, N3), lambda i: (0, 0)),
            pl.BlockSpec((1, N3), lambda i: (0, 0)),
        ],
        out_specs=pl.BlockSpec((tr, N3), lambda i: (i, 0)),
        out_shape=jax.ShapeDtypeStruct((R, N3), jnp.bfloat16),
        compiler_params=pltpu.CompilerParams(
            dimension_semantics=("parallel",),
            vmem_limit_bytes=VMEM_LIMIT,
        ),
    )(x_flat, vec_a, wqkv, bqkv)


# ----------------------------------------------------------------------------
# Kernel 3: attention core, one program per (batch, head)
# ----------------------------------------------------------------------------
def attn_core_kernel(q_ref, k_ref, v_ref, o_ref, *, s_valid):
    q = q_ref[0]                                # (S, hd) bf16 (scale pre-folded)
    k = k_ref[0]
    v = v_ref[0]
    s = jax.lax.dot_general(
        q, k, (((1,), (1,)), ((), ())), preferred_element_type=jnp.float32
    )                                           # (S, S) f32
    col = jax.lax.broadcasted_iota(jnp.int32, s.shape, 1)
    s = jnp.where(col < s_valid, s, -1e30)      # mask padded key columns
    s = s - jnp.max(s, axis=-1, keepdims=True)
    e = jnp.exp(s)
    p = e * pl.reciprocal(jnp.sum(e, axis=-1, keepdims=True), approx=True)
    ctx = jnp.dot(p.astype(jnp.bfloat16), v, preferred_element_type=jnp.float32)
    o_ref[0] = ctx.astype(o_ref.dtype)


def attn_core(q, k, v, *, s_valid):
    BH, S, hd = q.shape
    spec = pl.BlockSpec((1, S, hd), lambda i: (i, 0, 0))
    return pl.pallas_call(
        functools.partial(attn_core_kernel, s_valid=s_valid),
        grid=(BH,),
        in_specs=[spec, spec, spec],
        out_specs=spec,
        out_shape=jax.ShapeDtypeStruct((BH, S, hd), jnp.bfloat16),
        compiler_params=pltpu.CompilerParams(
            dimension_semantics=("parallel",),
            vmem_limit_bytes=VMEM_LIMIT,
        ),
    )(q, k, v)


# ----------------------------------------------------------------------------
# Kernel 4: attention output projection + residual + LN2 + MLP + residual
#           (row-tiled over all tokens; weights resident at constant block idx)
# ----------------------------------------------------------------------------
def proj_mlp_kernel(x_ref, ctx_ref, vec_ref, wo_ref, w1_ref, b1_ref, w2_ref,
                    o_ref):
    x = x_ref[...]                              # (tr, D) f32 residual stream
    ctx = ctx_ref[...]                          # (tr, D) bf16 merged heads
    b_o = vec_ref[0:1, :]
    g2 = vec_ref[1:2, :]
    be2 = vec_ref[2:3, :]
    b2 = vec_ref[3:4, :]

    attn = jnp.dot(ctx, wo_ref[...], preferred_element_type=jnp.float32) + b_o
    y = x + attn

    h = _layernorm(y, g2, be2, LN_EPS).astype(jnp.bfloat16)
    h = jnp.dot(h, w1_ref[...], preferred_element_type=jnp.float32) + b1_ref[...]
    h = jax.nn.gelu(h, approximate=True).astype(jnp.bfloat16)
    h = jnp.dot(h, w2_ref[...], preferred_element_type=jnp.float32) + b2
    o_ref[...] = y + h


def proj_mlp(x_flat, ctx_flat, vec_c, wo, w1, b1, w2):
    R, D = x_flat.shape
    M = w1.shape[1]
    tr = _pick_tile(R, 512)
    return pl.pallas_call(
        proj_mlp_kernel,
        grid=(R // tr,),
        in_specs=[
            pl.BlockSpec((tr, D), lambda i: (i, 0)),
            pl.BlockSpec((tr, D), lambda i: (i, 0)),
            pl.BlockSpec(vec_c.shape, lambda i: (0, 0)),
            pl.BlockSpec((D, D), lambda i: (0, 0)),
            pl.BlockSpec((D, M), lambda i: (0, 0)),
            pl.BlockSpec((1, M), lambda i: (0, 0)),
            pl.BlockSpec((M, D), lambda i: (0, 0)),
        ],
        out_specs=pl.BlockSpec((tr, D), lambda i: (i, 0)),
        out_shape=jax.ShapeDtypeStruct((R, D), jnp.float32),
        compiler_params=pltpu.CompilerParams(
            dimension_semantics=("parallel",),
            vmem_limit_bytes=VMEM_LIMIT,
        ),
    )(x_flat, ctx_flat, vec_c, wo, w1, b1, w2)


# ----------------------------------------------------------------------------
# Kernel 5: final LayerNorm(eps=1e-6) on the class token + Linear head
# ----------------------------------------------------------------------------
def head_kernel(x_ref, lng, lnb, w_ref, b_ref, o_ref):
    h = _layernorm(x_ref[...], lng[...], lnb[...], 1e-6).astype(jnp.bfloat16)
    o_ref[...] = (
        jnp.dot(h, w_ref[...], preferred_element_type=jnp.float32) + b_ref[...]
    )


def head(cls_tok, ln_g, ln_b, fc_w, fc_b):
    B, D = cls_tok.shape
    C = fc_w.shape[1]
    return pl.pallas_call(
        head_kernel,
        out_shape=jax.ShapeDtypeStruct((B, C), jnp.float32),
        compiler_params=pltpu.CompilerParams(vmem_limit_bytes=VMEM_LIMIT),
    )(cls_tok, ln_g, ln_b, fc_w, fc_b)


# ----------------------------------------------------------------------------
# Parameter init (deterministic, synthetic; PyTorch-like layout, f32)
# ----------------------------------------------------------------------------
def init_params(key, n_channels, n_classes, patch_size, D, num_heads,
                num_encoders, mlp_size, spatial):
    n = (spatial // patch_size) ** 2
    ks = iter(jax.random.split(key, 16 + num_encoders * 16))

    def rnd(shape, scale=0.02):
        return (scale * jax.random.normal(next(ks), shape)).astype(jnp.float32)

    params = {
        "conv_w": rnd((D, n_channels, patch_size, patch_size)),  # PyTorch OIHW
        "conv_b": rnd((D,)),
        "x_class": rnd((1, 1, D), scale=1.0),
        "pe": rnd((1, n + 1, D), scale=1.0),
        "ln_g": jnp.ones((D,), jnp.float32),
        "ln_b": jnp.zeros((D,), jnp.float32),
        "fc_w": rnd((D, n_classes)),
        "fc_b": rnd((n_classes,)),
        "encoders": [],
    }
    for _ in range(num_encoders):
        enc = {
            "ln1_g": jnp.ones((1, D), jnp.float32),
            "ln1_b": jnp.zeros((1, D), jnp.float32),
            "wq": rnd((D, D)), "bq": rnd((1, D)),
            "wk": rnd((D, D)), "bk": rnd((1, D)),
            "wv": rnd((D, D)), "bv": rnd((1, D)),
            "wo": rnd((D, D)), "bo": rnd((1, D)),
            "ln2_g": jnp.ones((1, D), jnp.float32),
            "ln2_b": jnp.zeros((1, D), jnp.float32),
            "w1": rnd((D, mlp_size)), "b1": rnd((1, mlp_size)),
            "w2": rnd((mlp_size, D)), "b2": rnd((1, D)),
        }
        params["encoders"].append(enc)
    return params


# ----------------------------------------------------------------------------
# Parameter preparation: fuse QKV, fold attention scale, pack small vectors,
# cast matmul weights to bf16 (f32 accumulation stays inside the kernels).
# ----------------------------------------------------------------------------
def _pack_rows(rows):
    mat = jnp.concatenate(rows, axis=0)          # (k, D)
    pad = (-mat.shape[0]) % 8
    if pad:
        mat = jnp.pad(mat, ((0, pad), (0, 0)))
    return mat.astype(jnp.float32)               # (ceil8(k), D)


def prepare_params(params, num_heads):
    D = params["conv_w"].shape[0]
    C = params["conv_w"].shape[1]
    p = params["conv_w"].shape[2]
    hd = D // num_heads
    scale = 1.0 / math.sqrt(hd)

    prep = {
        "w_patch": params["conv_w"].reshape(D, C * p * p).T.astype(jnp.bfloat16),
        "conv_b": params["conv_b"].reshape(1, D).astype(jnp.float32),
        "x_class": params["x_class"],
        "pe": params["pe"],
        "ln_g": params["ln_g"].reshape(1, D),
        "ln_b": params["ln_b"].reshape(1, D),
        "fc_w": params["fc_w"].astype(jnp.bfloat16),
        "fc_b": params["fc_b"].reshape(1, -1).astype(jnp.float32),
        "encoders": [],
    }
    for e in params["encoders"]:
        wqkv = jnp.concatenate([e["wq"] * scale, e["wk"], e["wv"]], axis=1)
        bqkv = jnp.concatenate([e["bq"] * scale, e["bk"], e["bv"]], axis=1)
        prep["encoders"].append({
            "vec_a": _pack_rows([e["ln1_g"], e["ln1_b"]]),            # (8, D)
            "wqkv": wqkv.astype(jnp.bfloat16),                        # (D, 3D)
            "bqkv": bqkv.astype(jnp.float32),                         # (1, 3D)
            "wo": e["wo"].astype(jnp.bfloat16),                       # (D, D)
            "vec_c": _pack_rows([e["bo"], e["ln2_g"], e["ln2_b"], e["b2"]]),
            "w1": e["w1"].astype(jnp.bfloat16),                       # (D, M)
            "b1": e["b1"].astype(jnp.float32),                        # (1, M)
            "w2": e["w2"].astype(jnp.bfloat16),                       # (M, D)
        })
    return prep


# ----------------------------------------------------------------------------
# Forward pass
# ----------------------------------------------------------------------------
@functools.partial(jax.jit, static_argnames=("patch_size", "num_heads"))
def transformer_forward(x, prep, *, patch_size, num_heads):
    B, C, H, W = x.shape
    p = patch_size
    Hp, Wp = H // p, W // p
    n = Hp * Wp
    D = prep["w_patch"].shape[1]
    hd = D // num_heads

    # Conv2d(kernel=stride=patch) == patch extraction (layout glue) + matmul.
    patches = (
        x.reshape(B, C, Hp, p, Wp, p)
        .transpose(0, 2, 4, 1, 3, 5)               # (B, Hp, Wp, C, p, p)
        .reshape(B * n, C * p * p)
    )
    emb = matmul_bias(patches, prep["w_patch"], prep["conv_b"])  # (B*n, D) f32
    emb = emb.reshape(B, n, D)

    # class token + positional encoding (glue), pad sequence to multiple of 8.
    cls = jnp.broadcast_to(prep["x_class"], (B, 1, D))
    seq = jnp.concatenate([cls, emb], axis=1) + prep["pe"]       # (B, S, D)
    S = n + 1
    S_pad = -(-S // 8) * 8
    seq = jnp.pad(seq, ((0, 0), (0, S_pad - S), (0, 0)))

    x_flat = seq.reshape(B * S_pad, D)                           # f32 residual
    for enc in prep["encoders"]:
        # LN1 + fused QKV projection (row-tiled).
        qkv = ln_qkv(x_flat, enc["vec_a"], enc["wqkv"], enc["bqkv"])
        # Head split: wrapper-side layout plumbing only.
        qkv = qkv.reshape(B, S_pad, 3, num_heads, hd).transpose(2, 0, 3, 1, 4)
        qkv = qkv.reshape(3, B * num_heads, S_pad, hd)
        ctx = attn_core(qkv[0], qkv[1], qkv[2], s_valid=S)       # (B*H,S,hd)
        ctx = (ctx.reshape(B, num_heads, S_pad, hd)
                  .transpose(0, 2, 1, 3)
                  .reshape(B * S_pad, D))
        # Output projection + residual + LN2 + MLP + residual (row-tiled).
        x_flat = proj_mlp(x_flat, ctx, enc["vec_c"], enc["wo"],
                          enc["w1"], enc["b1"], enc["w2"])

    seq = x_flat.reshape(B, S_pad, D)
    cls_tok = seq[:, 0, :]
    return head(cls_tok, prep["ln_g"], prep["ln_b"],
                prep["fc_w"], prep["fc_b"])


# ----------------------------------------------------------------------------
if __name__ == "__main__":
    # Small shapes consistent with the module.
    batch = 2
    n_channels = 4
    spatial = 16
    patch_size = 4
    D = 32
    num_heads = 4
    num_encoders = 2
    mlp_size = 64
    n_classes = 10

    key = jax.random.PRNGKey(0)
    k_x, k_p = jax.random.split(key)

    x = jax.random.normal(
        k_x, (batch, n_channels, spatial, spatial), dtype=jnp.float32
    )
    params = init_params(
        k_p, n_channels, n_classes, patch_size, D, num_heads,
        num_encoders, mlp_size, spatial,
    )
    prep = prepare_params(params, num_heads)

    out = transformer_forward(x, prep, patch_size=patch_size,
                              num_heads=num_heads)
    out = jax.block_until_ready(out)
    assert out.shape == (batch, n_classes), out.shape
    print("KERNEL_OK")
</pallas_src>

<mosaic_0001>
module attributes {stable_mosaic.version = 11 : i64} {
  func.func @matmul_bias_kernel(%arg0: i32, %arg1: i32, %arg2: i32, %arg3: memref<32x64xf32, #tpu.memory_space<vmem>>, %arg4: memref<64x32xbf16, #tpu.memory_space<vmem>>, %arg5: memref<1x32xf32, #tpu.memory_space<vmem>>, %arg6: memref<32x32xf32, #tpu.memory_space<vmem>>, %arg7: memref<32x32xf32, #tpu.memory_space<vmem>>) attributes {dimension_semantics = [#tpu.dimension_semantics<parallel>, #tpu.dimension_semantics<parallel>, #tpu.dimension_semantics<arbitrary>], iteration_bounds = array<i64: 1, 1, 1>, scalar_prefetch = 0 : i64, scratch_operands = 1 : i64, tpu.core_type = #tpu.core_type<tc>, window_params = [{transform_indices = @transform_0, window_bounds = array<i64: 32, 64>}, {transform_indices = @transform_1, window_bounds = array<i64: 64, 32>}, {transform_indices = @transform_2, window_bounds = array<i64: 1, 32>}, {transform_indices = @transform_3, window_bounds = array<i64: 32, 32>}]} {
    %c0_i32 = arith.constant 0 : i32
    %0 = arith.cmpi eq, %arg2, %c0_i32 : i32
    %1 = arith.extui %0 : i1 to i32
    %c0_i32_0 = arith.constant 0 : i32
    %2 = arith.cmpi ne, %1, %c0_i32_0 : i32
    scf.if %2 {
      %cst_10 = arith.constant 0.000000e+00 : f32
      %13 = vector.broadcast %cst_10 : f32 to vector<32x32xf32>
      %c0_11 = arith.constant 0 : index
      %c0_12 = arith.constant 0 : index
      %14 = vector.load %arg7[%c0_11, %c0_12] : memref<32x32xf32, #tpu.memory_space<vmem>>, vector<32x32xf32>
      tpu.vector_store %arg7[%c0_11, %c0_12], %13 {strides = array<i32>} : memref<32x32xf32, #tpu.memory_space<vmem>>, vector<32x32xf32>,
    } else {
    }
    %c0 = arith.constant 0 : index
    %c0_1 = arith.constant 0 : index
    %3 = vector.load %arg7[%c0, %c0_1] : memref<32x32xf32, #tpu.memory_space<vmem>>, vector<32x32xf32>
    %c0_2 = arith.constant 0 : index
    %c0_3 = arith.constant 0 : index
    %4 = vector.load %arg3[%c0_2, %c0_3] : memref<32x64xf32, #tpu.memory_space<vmem>>, vector<32x64xf32>
    %5 = arith.truncf %4 : vector<32x64xf32> to vector<32x64xbf16>
    %c0_4 = arith.constant 0 : index
    %c0_5 = arith.constant 0 : index
    %6 = vector.load %arg4[%c0_4, %c0_5] : memref<64x32xbf16, #tpu.memory_space<vmem>>, vector<64x32xbf16>
    %cst = arith.constant dense<0.000000e+00> : vector<32x32xf32>
    %7 = tpu.matmul %5, %6, %cst {dimension_numbers = #tpu.dot_dimension_numbers<[1], [0], [0], [1], [0, 0, 1, 1], [], []>} : vector<32x64xbf16>, vector<64x32xbf16>, vector<32x32xf32> -> vector<32x32xf32>
    %8 = arith.addf %3, %7 : vector<32x32xf32>
    %c0_6 = arith.constant 0 : index
    %c0_7 = arith.constant 0 : index
    %9 = vector.load %arg7[%c0_6, %c0_7] : memref<32x32xf32, #tpu.memory_space<vmem>>, vector<32x32xf32>
    tpu.vector_store %arg7[%c0_6, %c0_7], %8 {strides = array<i32>} : memref<32x32xf32, #tpu.memory_space<vmem>>, vector<32x32xf32>,
    %c0_i32_8 = arith.constant 0 : i32
    %10 = arith.cmpi eq, %arg2, %c0_i32_8 : i32
    %11 = arith.extui %10 : i1 to i32
    %c0_i32_9 = arith.constant 0 : i32
    %12 = arith.cmpi ne, %11, %c0_i32_9 : i32
    scf.if %12 {
      %c0_10 = arith.constant 0 : index
      %c0_11 = arith.constant 0 : index
      %13 = vector.load %arg7[%c0_10, %c0_11] : memref<32x32xf32, #tpu.memory_space<vmem>>, vector<32x32xf32>
      %c0_12 = arith.constant 0 : index
      %c0_13 = arith.constant 0 : index
      %14 = vector.load %arg5[%c0_12, %c0_13] : memref<1x32xf32, #tpu.memory_space<vmem>>, vector<1x32xf32>
      %15 = vector.broadcast %14 : vector<1x32xf32> to vector<32x32xf32>
      %16 = arith.addf %13, %15 : vector<32x32xf32>
      %c0_14 = arith.constant 0 : index
      %c0_15 = arith.constant 0 : index
      %17 = vector.load %arg6[%c0_14, %c0_15] : memref<32x32xf32, #tpu.memory_space<vmem>>, vector<32x32xf32>
      tpu.vector_store %arg6[%c0_14, %c0_15], %16 {strides = array<i32>} : memref<32x32xf32, #tpu.memory_space<vmem>>, vector<32x32xf32>,
    } else {
    }
    return
  }
  func.func @transform_0(%arg0: i32, %arg1: i32, %arg2: i32) -> (i32, i32) {
    %c0_i32 = arith.constant 0 : i32
    return %arg0, %arg2 : i32, i32
  }
  func.func @transform_1(%arg0: i32, %arg1: i32, %arg2: i32) -> (i32, i32) {
    %c0_i32 = arith.constant 0 : i32
    return %arg2, %arg1 : i32, i32
  }
  func.func @transform_2(%arg0: i32, %arg1: i32, %arg2: i32) -> (i32, i32) {
    %c0_i32 = arith.constant 0 : i32
    %c0_i32_0 = arith.constant 0 : i32
    return %c0_i32, %arg1 : i32, i32
  }
  func.func @transform_3(%arg0: i32, %arg1: i32, %arg2: i32) -> (i32, i32) {
    %c0_i32 = arith.constant 0 : i32
    return %arg0, %arg1 : i32, i32
  }
}

module attributes {stable_mosaic.version = 11 : i64} {
  func.func @ln_qkv_kernel(%arg0: i32, %arg1: memref<48x32xf32, #tpu.memory_space<vmem>>, %arg2: memref<8x32xf32, #tpu.memory_space<vmem>>, %arg3: memref<32x96xbf16, #tpu.memory_space<vmem>>, %arg4: memref<1x96xf32, #tpu.memory_space<vmem>>, %arg5: memref<48x96xbf16, #tpu.memory_space<vmem>>) attributes {dimension_semantics = [#tpu.dimension_semantics<parallel>], iteration_bounds = array<i64: 1>, scalar_prefetch = 0 : i64, scratch_operands = 0 : i64, tpu.core_type = #tpu.core_type<tc>, window_params = [{transform_indices = @transform_0, window_bounds = array<i64: 48, 32>}, {pipeline_mode = #tpu.pipeline_mode<synchronous>, transform_indices = @transform_1, window_bounds = array<i64: 8, 32>}, {pipeline_mode = #tpu.pipeline_mode<synchronous>, transform_indices = @transform_2, window_bounds = array<i64: 32, 96>}, {pipeline_mode = #tpu.pipeline_mode<synchronous>, transform_indices = @transform_3, window_bounds = array<i64: 1, 96>}, {transform_indices = @transform_4, window_bounds = array<i64: 48, 96>}]} {
    %c0 = arith.constant 0 : index
    %c0_0 = arith.constant 0 : index
    %0 = vector.load %arg1[%c0, %c0_0] : memref<48x32xf32, #tpu.memory_space<vmem>>, vector<48x32xf32>
    %c0_1 = arith.constant 0 : index
    %c0_2 = arith.constant 0 : index
    %1 = vector.load %arg2[%c0_1, %c0_2] : memref<8x32xf32, #tpu.memory_space<vmem>>, vector<1x32xf32>
    %c1 = arith.constant 1 : index
    %c0_3 = arith.constant 0 : index
    %2 = vector.load %arg2[%c1, %c0_3] : memref<8x32xf32, #tpu.memory_space<vmem>>, vector<1x32xf32>
    %cst = arith.constant dense<0.000000e+00> : vector<48xf32>
    %3 = vector.multi_reduction <add>, %0, %cst [1] : vector<48x32xf32> to vector<48xf32>
    %4 = vector.shape_cast %3 : vector<48xf32> to vector<48x1xf32>
    %cst_4 = arith.constant 3.200000e+01 : f32
    %5 = vector.broadcast %cst_4 : f32 to vector<48x1xf32>
    %6 = arith.divf %4, %5 : vector<48x1xf32>
    %7 = vector.broadcast %6 : vector<48x1xf32> to vector<48x32xf32>
    %8 = arith.subf %0, %7 : vector<48x32xf32>
    %9 = arith.mulf %8, %8 : vector<48x32xf32>
    %cst_5 = arith.constant dense<0.000000e+00> : vector<48xf32>
    %10 = vector.multi_reduction <add>, %9, %cst_5 [1] : vector<48x32xf32> to vector<48xf32>
    %11 = vector.shape_cast %10 : vector<48xf32> to vector<48x1xf32>
    %cst_6 = arith.constant 3.200000e+01 : f32
    %12 = vector.broadcast %cst_6 : f32 to vector<48x1xf32>
    %13 = arith.divf %11, %12 : vector<48x1xf32>
    %14 = vector.broadcast %6 : vector<48x1xf32> to vector<48x32xf32>
    %15 = arith.subf %0, %14 : vector<48x32xf32>
    %cst_7 = arith.constant 9.99999974E-6 : f32
    %16 = vector.broadcast %cst_7 : f32 to vector<48x1xf32>
    %17 = arith.addf %13, %16 : vector<48x1xf32>
    %18 = math.rsqrt %17 : vector<48x1xf32>
    %19 = vector.broadcast %18 : vector<48x1xf32> to vector<48x32xf32>
    %20 = arith.mulf %15, %19 : vector<48x32xf32>
    %21 = vector.broadcast %1 : vector<1x32xf32> to vector<48x32xf32>
    %22 = arith.mulf %20, %21 : vector<48x32xf32>
    %23 = vector.broadcast %2 : vector<1x32xf32> to vector<48x32xf32>
    %24 = arith.addf %22, %23 : vector<48x32xf32>
    %25 = arith.truncf %24 : vector<48x32xf32> to vector<48x32xbf16>
    %c0_8 = arith.constant 0 : index
    %c0_9 = arith.constant 0 : index
    %26 = vector.load %arg3[%c0_8, %c0_9] : memref<32x96xbf16, #tpu.memory_space<vmem>>, vector<32x96xbf16>
    %cst_10 = arith.constant dense<0.000000e+00> : vector<48x96xf32>
    %27 = tpu.matmul %25, %26, %cst_10 {dimension_numbers = #tpu.dot_dimension_numbers<[1], [0], [0], [1], [0, 0, 1, 1], [], []>} : vector<48x32xbf16>, vector<32x96xbf16>, vector<48x96xf32> -> vector<48x96xf32>
    %c0_11 = arith.constant 0 : index
    %c0_12 = arith.constant 0 : index
    %28 = vector.load %arg4[%c0_11, %c0_12] : memref<1x96xf32, #tpu.memory_space<vmem>>, vector<1x96xf32>
    %29 = vector.broadcast %28 : vector<1x96xf32> to vector<48x96xf32>
    %30 = arith.addf %27, %29 : vector<48x96xf32>
    %31 = arith.truncf %30 : vector<48x96xf32> to vector<48x96xbf16>
    %c0_13 = arith.constant 0 : index
    %c0_14 = arith.constant 0 : index
    %32 = vector.load %arg5[%c0_13, %c0_14] : memref<48x96xbf16, #tpu.memory_space<vmem>>, vector<48x96xbf16>
    tpu.vector_store %arg5[%c0_13, %c0_14], %31 {strides = array<i32>} : memref<48x96xbf16, #tpu.memory_space<vmem>>, vector<48x96xbf16>,
    return
  }
  func.func @transform_0(%arg0: i32) -> (i32, i32) {
    %c0_i32 = arith.constant 0 : i32
    %c0_i32_0 = arith.constant 0 : i32
    return %arg0, %c0_i32 : i32, i32
  }
  func.func @transform_1(%arg0: i32) -> (i32, i32) {
    %c0_i32 = arith.constant 0 : i32
    %c0_i32_0 = arith.constant 0 : i32
    %c0_i32_1 = arith.constant 0 : i32
    return %c0_i32, %c0_i32_0 : i32, i32
  }
  func.func @transform_2(%arg0: i32) -> (i32, i32) {
    %c0_i32 = arith.constant 0 : i32
    %c0_i32_0 = arith.constant 0 : i32
    %c0_i32_1 = arith.constant 0 : i32
    return %c0_i32, %c0_i32_0 : i32, i32
  }
  func.func @transform_3(%arg0: i32) -> (i32, i32) {
    %c0_i32 = arith.constant 0 : i32
    %c0_i32_0 = arith.constant 0 : i32
    %c0_i32_1 = arith.constant 0 : i32
    return %c0_i32, %c0_i32_0 : i32, i32
  }
  func.func @transform_4(%arg0: i32) -> (i32, i32) {
    %c0_i32 = arith.constant 0 : i32
    %c0_i32_0 = arith.constant 0 : i32
    return %arg0, %c0_i32 : i32, i32
  }
}

module attributes {stable_mosaic.version = 11 : i64} {
  func.func @attn_core_kernel(%arg0: i32, %arg1: memref<1x24x8xbf16, #tpu.memory_space<vmem>>, %arg2: memref<1x24x8xbf16, #tpu.memory_space<vmem>>, %arg3: memref<1x24x8xbf16, #tpu.memory_space<vmem>>, %arg4: memref<1x24x8xbf16, #tpu.memory_space<vmem>>) attributes {dimension_semantics = [#tpu.dimension_semantics<parallel>], iteration_bounds = array<i64: 8>, scalar_prefetch = 0 : i64, scratch_operands = 0 : i64, tpu.core_type = #tpu.core_type<tc>, window_params = [{transform_indices = @transform_0, window_bounds = array<i64: 1, 24, 8>}, {transform_indices = @transform_1, window_bounds = array<i64: 1, 24, 8>}, {transform_indices = @transform_2, window_bounds = array<i64: 1, 24, 8>}, {transform_indices = @transform_3, window_bounds = array<i64: 1, 24, 8>}]} {
    %c0 = arith.constant 0 : index
    %c0_0 = arith.constant 0 : index
    %c0_1 = arith.constant 0 : index
    %0 = vector.load %arg1[%c0, %c0_0, %c0_1] : memref<1x24x8xbf16, #tpu.memory_space<vmem>>, vector<1x24x8xbf16>
    %1 = vector.shape_cast %0 : vector<1x24x8xbf16> to vector<24x8xbf16>
    %c0_2 = arith.constant 0 : index
    %c0_3 = arith.constant 0 : index
    %c0_4 = arith.constant 0 : index
    %2 = vector.load %arg2[%c0_2, %c0_3, %c0_4] : memref<1x24x8xbf16, #tpu.memory_space<vmem>>, vector<1x24x8xbf16>
    %3 = vector.shape_cast %2 : vector<1x24x8xbf16> to vector<24x8xbf16>
    %c0_5 = arith.constant 0 : index
    %c0_6 = arith.constant 0 : index
    %c0_7 = arith.constant 0 : index
    %4 = vector.load %arg3[%c0_5, %c0_6, %c0_7] : memref<1x24x8xbf16, #tpu.memory_space<vmem>>, vector<1x24x8xbf16>
    %5 = vector.shape_cast %4 : vector<1x24x8xbf16> to vector<24x8xbf16>
    %cst = arith.constant dense<0.000000e+00> : vector<24x24xf32>
    %6 = tpu.matmul %1, %3, %cst {dimension_numbers = #tpu.dot_dimension_numbers<[1], [1], [0], [0], [0, 0, 1, 0], [], []>} : vector<24x8xbf16>, vector<24x8xbf16>, vector<24x24xf32> -> vector<24x24xf32>
    %7 = tpu.iota {dimensions = array<i32: 1>} : vector<24x24xi32>
    %c17_i32 = arith.constant 17 : i32
    %8 = vector.broadcast %c17_i32 : i32 to vector<24x24xi32>
    %9 = arith.cmpi slt, %7, %8 : vector<24x24xi32>
    %cst_8 = arith.constant -1.000000e+30 : f32
    %10 = vector.broadcast %cst_8 : f32 to vector<24x24xf32>
    %11 = arith.select %9, %6, %10 : vector<24x24xi1>, vector<24x24xf32>
    %cst_9 = arith.constant dense<0xFF800000> : vector<24xf32>
    %12 = vector.multi_reduction <maximumf>, %11, %cst_9 [1] : vector<24x24xf32> to vector<24xf32>
    %13 = vector.shape_cast %12 : vector<24xf32> to vector<24x1xf32>
    %14 = vector.broadcast %13 : vector<24x1xf32> to vector<24x24xf32>
    %15 = arith.subf %11, %14 : vector<24x24xf32>
    %16 = math.exp %15 : vector<24x24xf32>
    %cst_10 = arith.constant dense<0.000000e+00> : vector<24xf32>
    %17 = vector.multi_reduction <add>, %16, %cst_10 [1] : vector<24x24xf32> to vector<24xf32>
    %18 = vector.shape_cast %17 : vector<24xf32> to vector<24x1xf32>
    %19 = tpu.reciprocal %18 {approx = true} : vector<24x1xf32> -> vector<24x1xf32>
    %20 = vector.broadcast %19 : vector<24x1xf32> to vector<24x24xf32>
    %21 = arith.mulf %16, %20 : vector<24x24xf32>
    %22 = arith.truncf %21 : vector<24x24xf32> to vector<24x24xbf16>
    %cst_11 = arith.constant dense<0.000000e+00> : vector<24x8xf32>
    %23 = tpu.matmul %22, %5, %cst_11 {dimension_numbers = #tpu.dot_dimension_numbers<[1], [0], [0], [1], [0, 0, 1, 1], [], []>} : vector<24x24xbf16>, vector<24x8xbf16>, vector<24x8xf32> -> vector<24x8xf32>
    %24 = arith.truncf %23 : vector<24x8xf32> to vector<24x8xbf16>
    %c0_12 = arith.constant 0 : index
    %c0_13 = arith.constant 0 : index
    %c0_14 = arith.constant 0 : index
    %25 = vector.load %arg4[%c0_12, %c0_13, %c0_14] : memref<1x24x8xbf16, #tpu.memory_space<vmem>>, vector<1x24x8xbf16>
    %26 = vector.shape_cast %25 : vector<1x24x8xbf16> to vector<24x8xbf16>
    %27 = vector.shape_cast %24 : vector<24x8xbf16> to vector<1x24x8xbf16>
    tpu.vector_store %arg4[%c0_12, %c0_13, %c0_14], %27 {strides = array<i32>} : memref<1x24x8xbf16, #tpu.memory_space<vmem>>, vector<1x24x8xbf16>,
    return
  }
  func.func @transform_0(%arg0: i32) -> (i32, i32, i32) {
    %c0_i32 = arith.constant 0 : i32
    %c0_i32_0 = arith.constant 0 : i32
    %c0_i32_1 = arith.constant 0 : i32
    return %arg0, %c0_i32, %c0_i32_0 : i32, i32, i32
  }
  func.func @transform_1(%arg0: i32) -> (i32, i32, i32) {
    %c0_i32 = arith.constant 0 : i32
    %c0_i32_0 = arith.constant 0 : i32
    %c0_i32_1 = arith.constant 0 : i32
    return %arg0, %c0_i32, %c0_i32_0 : i32, i32, i32
  }
  func.func @transform_2(%arg0: i32) -> (i32, i32, i32) {
    %c0_i32 = arith.constant 0 : i32
    %c0_i32_0 = arith.constant 0 : i32
    %c0_i32_1 = arith.constant 0 : i32
    return %arg0, %c0_i32, %c0_i32_0 : i32, i32, i32
  }
  func.func @transform_3(%arg0: i32) -> (i32, i32, i32) {
    %c0_i32 = arith.constant 0 : i32
    %c0_i32_0 = arith.constant 0 : i32
    %c0_i32_1 = arith.constant 0 : i32
    return %arg0, %c0_i32, %c0_i32_0 : i32, i32, i32
  }
}

module attributes {stable_mosaic.version = 11 : i64} {
  func.func @proj_mlp_kernel(%arg0: i32, %arg1: memref<48x32xf32, #tpu.memory_space<vmem>>, %arg2: memref<48x32xbf16, #tpu.memory_space<vmem>>, %arg3: memref<8x32xf32, #tpu.memory_space<vmem>>, %arg4: memref<32x32xbf16, #tpu.memory_space<vmem>>, %arg5: memref<32x64xbf16, #tpu.memory_space<vmem>>, %arg6: memref<1x64xf32, #tpu.memory_space<vmem>>, %arg7: memref<64x32xbf16, #tpu.memory_space<vmem>>, %arg8: memref<48x32xf32, #tpu.memory_space<vmem>>) attributes {dimension_semantics = [#tpu.dimension_semantics<parallel>], iteration_bounds = array<i64: 1>, scalar_prefetch = 0 : i64, scratch_operands = 0 : i64, tpu.core_type = #tpu.core_type<tc>, window_params = [{transform_indices = @transform_0, window_bounds = array<i64: 48, 32>}, {transform_indices = @transform_1, window_bounds = array<i64: 48, 32>}, {pipeline_mode = #tpu.pipeline_mode<synchronous>, transform_indices = @transform_2, window_bounds = array<i64: 8, 32>}, {pipeline_mode = #tpu.pipeline_mode<synchronous>, transform_indices = @transform_3, window_bounds = array<i64: 32, 32>}, {pipeline_mode = #tpu.pipeline_mode<synchronous>, transform_indices = @transform_4, window_bounds = array<i64: 32, 64>}, {pipeline_mode = #tpu.pipeline_mode<synchronous>, transform_indices = @transform_5, window_bounds = array<i64: 1, 64>}, {pipeline_mode = #tpu.pipeline_mode<synchronous>, transform_indices = @transform_6, window_bounds = array<i64: 64, 32>}, {transform_indices = @transform_7, window_bounds = array<i64: 48, 32>}]} {
    %c0 = arith.constant 0 : index
    %c0_0 = arith.constant 0 : index
    %0 = vector.load %arg1[%c0, %c0_0] : memref<48x32xf32, #tpu.memory_space<vmem>>, vector<48x32xf32>
    %c0_1 = arith.constant 0 : index
    %c0_2 = arith.constant 0 : index
    %1 = vector.load %arg2[%c0_1, %c0_2] : memref<48x32xbf16, #tpu.memory_space<vmem>>, vector<48x32xbf16>
    %c0_3 = arith.constant 0 : index
    %c0_4 = arith.constant 0 : index
    %2 = vector.load %arg3[%c0_3, %c0_4] : memref<8x32xf32, #tpu.memory_space<vmem>>, vector<1x32xf32>
    %c1 = arith.constant 1 : index
    %c0_5 = arith.constant 0 : index
    %3 = vector.load %arg3[%c1, %c0_5] : memref<8x32xf32, #tpu.memory_space<vmem>>, vector<1x32xf32>
    %c2 = arith.constant 2 : index
    %c0_6 = arith.constant 0 : index
    %4 = vector.load %arg3[%c2, %c0_6] : memref<8x32xf32, #tpu.memory_space<vmem>>, vector<1x32xf32>
    %c3 = arith.constant 3 : index
    %c0_7 = arith.constant 0 : index
    %5 = vector.load %arg3[%c3, %c0_7] : memref<8x32xf32, #tpu.memory_space<vmem>>, vector<1x32xf32>
    %c0_8 = arith.constant 0 : index
    %c0_9 = arith.constant 0 : index
    %6 = vector.load %arg4[%c0_8, %c0_9] : memref<32x32xbf16, #tpu.memory_space<vmem>>, vector<32x32xbf16>
    %cst = arith.constant dense<0.000000e+00> : vector<48x32xf32>
    %7 = tpu.matmul %1, %6, %cst {dimension_numbers = #tpu.dot_dimension_numbers<[1], [0], [0], [1], [0, 0, 1, 1], [], []>} : vector<48x32xbf16>, vector<32x32xbf16>, vector<48x32xf32> -> vector<48x32xf32>
    %8 = vector.broadcast %2 : vector<1x32xf32> to vector<48x32xf32>
    %9 = arith.addf %7, %8 : vector<48x32xf32>
    %10 = arith.addf %0, %9 : vector<48x32xf32>
    %cst_10 = arith.constant dense<0.000000e+00> : vector<48xf32>
    %11 = vector.multi_reduction <add>, %10, %cst_10 [1] : vector<48x32xf32> to vector<48xf32>
    %12 = vector.shape_cast %11 : vector<48xf32> to vector<48x1xf32>
    %cst_11 = arith.constant 3.200000e+01 : f32
    %13 = vector.broadcast %cst_11 : f32 to vector<48x1xf32>
    %14 = arith.divf %12, %13 : vector<48x1xf32>
    %15 = vector.broadcast %14 : vector<48x1xf32> to vector<48x32xf32>
    %16 = arith.subf %10, %15 : vector<48x32xf32>
    %17 = arith.mulf %16, %16 : vector<48x32xf32>
    %cst_12 = arith.constant dense<0.000000e+00> : vector<48xf32>
    %18 = vector.multi_reduction <add>, %17, %cst_12 [1] : vector<48x32xf32> to vector<48xf32>
    %19 = vector.shape_cast %18 : vector<48xf32> to vector<48x1xf32>
    %cst_13 = arith.constant 3.200000e+01 : f32
    %20 = vector.broadcast %cst_13 : f32 to vector<48x1xf32>
    %21 = arith.divf %19, %20 : vector<48x1xf32>
    %22 = vector.broadcast %14 : vector<48x1xf32> to vector<48x32xf32>
    %23 = arith.subf %10, %22 : vector<48x32xf32>
    %cst_14 = arith.constant 9.99999974E-6 : f32
    %24 = vector.broadcast %cst_14 : f32 to vector<48x1xf32>
    %25 = arith.addf %21, %24 : vector<48x1xf32>
    %26 = math.rsqrt %25 : vector<48x1xf32>
    %27 = vector.broadcast %26 : vector<48x1xf32> to vector<48x32xf32>
    %28 = arith.mulf %23, %27 : vector<48x32xf32>
    %29 = vector.broadcast %3 : vector<1x32xf32> to vector<48x32xf32>
    %30 = arith.mulf %28, %29 : vector<48x32xf32>
    %31 = vector.broadcast %4 : vector<1x32xf32> to vector<48x32xf32>
    %32 = arith.addf %30, %31 : vector<48x32xf32>
    %33 = arith.truncf %32 : vector<48x32xf32> to vector<48x32xbf16>
    %c0_15 = arith.constant 0 : index
    %c0_16 = arith.constant 0 : index
    %34 = vector.load %arg5[%c0_15, %c0_16] : memref<32x64xbf16, #tpu.memory_space<vmem>>, vector<32x64xbf16>
    %cst_17 = arith.constant dense<0.000000e+00> : vector<48x64xf32>
    %35 = tpu.matmul %33, %34, %cst_17 {dimension_numbers = #tpu.dot_dimension_numbers<[1], [0], [0], [1], [0, 0, 1, 1], [], []>} : vector<48x32xbf16>, vector<32x64xbf16>, vector<48x64xf32> -> vector<48x64xf32>
    %c0_18 = arith.constant 0 : index
    %c0_19 = arith.constant 0 : index
    %36 = vector.load %arg6[%c0_18, %c0_19] : memref<1x64xf32, #tpu.memory_space<vmem>>, vector<1x64xf32>
    %37 = vector.broadcast %36 : vector<1x64xf32> to vector<48x64xf32>
    %38 = arith.addf %35, %37 : vector<48x64xf32>
    %39 = arith.mulf %38, %38 : vector<48x64xf32>
    %40 = arith.mulf %38, %39 : vector<48x64xf32>
    %cst_20 = arith.constant 4.471500e-02 : f32
    %41 = vector.broadcast %cst_20 : f32 to vector<48x64xf32>
    %42 = arith.mulf %41, %40 : vector<48x64xf32>
    %43 = arith.addf %38, %42 : vector<48x64xf32>
    %cst_21 = arith.constant 0.797884583 : f32
    %44 = vector.broadcast %cst_21 : f32 to vector<48x64xf32>
    %45 = arith.mulf %44, %43 : vector<48x64xf32>
    %46 = math.tanh %45 : vector<48x64xf32>
    %cst_22 = arith.constant 1.000000e+00 : f32
    %47 = vector.broadcast %cst_22 : f32 to vector<48x64xf32>
    %48 = arith.addf %47, %46 : vector<48x64xf32>
    %cst_23 = arith.constant 5.000000e-01 : f32
    %49 = vector.broadcast %cst_23 : f32 to vector<48x64xf32>
    %50 = arith.mulf %49, %48 : vector<48x64xf32>
    %51 = arith.mulf %38, %50 : vector<48x64xf32>
    %52 = arith.truncf %51 : vector<48x64xf32> to vector<48x64xbf16>
    %c0_24 = arith.constant 0 : index
    %c0_25 = arith.constant 0 : index
    %53 = vector.load %arg7[%c0_24, %c0_25] : memref<64x32xbf16, #tpu.memory_space<vmem>>, vector<64x32xbf16>
    %cst_26 = arith.constant dense<0.000000e+00> : vector<48x32xf32>
    %54 = tpu.matmul %52, %53, %cst_26 {dimension_numbers = #tpu.dot_dimension_numbers<[1], [0], [0], [1], [0, 0, 1, 1], [], []>} : vector<48x64xbf16>, vector<64x32xbf16>, vector<48x32xf32> -> vector<48x32xf32>
    %55 = vector.broadcast %5 : vector<1x32xf32> to vector<48x32xf32>
    %56 = arith.addf %54, %55 : vector<48x32xf32>
    %57 = arith.addf %10, %56 : vector<48x32xf32>
    %c0_27 = arith.constant 0 : index
    %c0_28 = arith.constant 0 : index
    %58 = vector.load %arg8[%c0_27, %c0_28] : memref<48x32xf32, #tpu.memory_space<vmem>>, vector<48x32xf32>
    tpu.vector_store %arg8[%c0_27, %c0_28], %57 {strides = array<i32>} : memref<48x32xf32, #tpu.memory_space<vmem>>, vector<48x32xf32>,
    return
  }
  func.func @transform_0(%arg0: i32) -> (i32, i32) {
    %c0_i32 = arith.constant 0 : i32
    %c0_i32_0 = arith.constant 0 : i32
    return %arg0, %c0_i32 : i32, i32
  }
  func.func @transform_1(%arg0: i32) -> (i32, i32) {
    %c0_i32 = arith.constant 0 : i32
    %c0_i32_0 = arith.constant 0 : i32
    return %arg0, %c0_i32 : i32, i32
  }
  func.func @transform_2(%arg0: i32) -> (i32, i32) {
    %c0_i32 = arith.constant 0 : i32
    %c0_i32_0 = arith.constant 0 : i32
    %c0_i32_1 = arith.constant 0 : i32
    return %c0_i32, %c0_i32_0 : i32, i32
  }
  func.func @transform_3(%arg0: i32) -> (i32, i32) {
    %c0_i32 = arith.constant 0 : i32
    %c0_i32_0 = arith.constant 0 : i32
    %c0_i32_1 = arith.constant 0 : i32
    return %c0_i32, %c0_i32_0 : i32, i32
  }
  func.func @transform_4(%arg0: i32) -> (i32, i32) {
    %c0_i32 = arith.constant 0 : i32
    %c0_i32_0 = arith.constant 0 : i32
    %c0_i32_1 = arith.constant 0 : i32
    return %c0_i32, %c0_i32_0 : i32, i32
  }
  func.func @transform_5(%arg0: i32) -> (i32, i32) {
    %c0_i32 = arith.constant 0 : i32
    %c0_i32_0 = arith.constant 0 : i32
    %c0_i32_1 = arith.constant 0 : i32
    return %c0_i32, %c0_i32_0 : i32, i32
  }
  func.func @transform_6(%arg0: i32) -> (i32, i32) {
    %c0_i32 = arith.constant 0 : i32
    %c0_i32_0 = arith.constant 0 : i32
    %c0_i32_1 = arith.constant 0 : i32
    return %c0_i32, %c0_i32_0 : i32, i32
  }
  func.func @transform_7(%arg0: i32) -> (i32, i32) {
    %c0_i32 = arith.constant 0 : i32
    %c0_i32_0 = arith.constant 0 : i32
    return %arg0, %c0_i32 : i32, i32
  }
}

module attributes {stable_mosaic.version = 11 : i64} {
  func.func @head_kernel(%arg0: memref<2x32xf32, #tpu.memory_space<vmem>>, %arg1: memref<1x32xf32, #tpu.memory_space<vmem>>, %arg2: memref<1x32xf32, #tpu.memory_space<vmem>>, %arg3: memref<32x10xbf16, #tpu.memory_space<vmem>>, %arg4: memref<1x10xf32, #tpu.memory_space<vmem>>, %arg5: memref<2x10xf32, #tpu.memory_space<vmem>>) attributes {dimension_semantics = [], scalar_prefetch = 0 : i64, scratch_operands = 0 : i64, tpu.core_type = #tpu.core_type<tc>} {
    %c0 = arith.constant 0 : index
    %c0_0 = arith.constant 0 : index
    %0 = vector.load %arg0[%c0, %c0_0] : memref<2x32xf32, #tpu.memory_space<vmem>>, vector<2x32xf32>
    %c0_1 = arith.constant 0 : index
    %c0_2 = arith.constant 0 : index
    %1 = vector.load %arg1[%c0_1, %c0_2] : memref<1x32xf32, #tpu.memory_space<vmem>>, vector<1x32xf32>
    %c0_3 = arith.constant 0 : index
    %c0_4 = arith.constant 0 : index
    %2 = vector.load %arg2[%c0_3, %c0_4] : memref<1x32xf32, #tpu.memory_space<vmem>>, vector<1x32xf32>
    %cst = arith.constant dense<0.000000e+00> : vector<2xf32>
    %3 = vector.multi_reduction <add>, %0, %cst [1] : vector<2x32xf32> to vector<2xf32>
    %4 = vector.shape_cast %3 : vector<2xf32> to vector<2x1xf32>
    %cst_5 = arith.constant 3.200000e+01 : f32
    %5 = vector.broadcast %cst_5 : f32 to vector<2x1xf32>
    %6 = arith.divf %4, %5 : vector<2x1xf32>
    %7 = vector.broadcast %6 : vector<2x1xf32> to vector<2x32xf32>
    %8 = arith.subf %0, %7 : vector<2x32xf32>
    %9 = arith.mulf %8, %8 : vector<2x32xf32>
    %cst_6 = arith.constant dense<0.000000e+00> : vector<2xf32>
    %10 = vector.multi_reduction <add>, %9, %cst_6 [1] : vector<2x32xf32> to vector<2xf32>
    %11 = vector.shape_cast %10 : vector<2xf32> to vector<2x1xf32>
    %cst_7 = arith.constant 3.200000e+01 : f32
    %12 = vector.broadcast %cst_7 : f32 to vector<2x1xf32>
    %13 = arith.divf %11, %12 : vector<2x1xf32>
    %14 = vector.broadcast %6 : vector<2x1xf32> to vector<2x32xf32>
    %15 = arith.subf %0, %14 : vector<2x32xf32>
    %cst_8 = arith.constant 9.99999997E-7 : f32
    %16 = vector.broadcast %cst_8 : f32 to vector<2x1xf32>
    %17 = arith.addf %13, %16 : vector<2x1xf32>
    %18 = math.rsqrt %17 : vector<2x1xf32>
    %19 = vector.broadcast %18 : vector<2x1xf32> to vector<2x32xf32>
    %20 = arith.mulf %15, %19 : vector<2x32xf32>
    %21 = vector.broadcast %1 : vector<1x32xf32> to vector<2x32xf32>
    %22 = arith.mulf %20, %21 : vector<2x32xf32>
    %23 = vector.broadcast %2 : vector<1x32xf32> to vector<2x32xf32>
    %24 = arith.addf %22, %23 : vector<2x32xf32>
    %25 = arith.truncf %24 : vector<2x32xf32> to vector<2x32xbf16>
    %c0_9 = arith.constant 0 : index
    %c0_10 = arith.constant 0 : index
    %26 = vector.load %arg3[%c0_9, %c0_10] : memref<32x10xbf16, #tpu.memory_space<vmem>>, vector<32x10xbf16>
    %cst_11 = arith.constant dense<0.000000e+00> : vector<2x10xf32>
    %27 = tpu.matmul %25, %26, %cst_11 {dimension_numbers = #tpu.dot_dimension_numbers<[1], [0], [0], [1], [0, 0, 1, 1], [], []>} : vector<2x32xbf16>, vector<32x10xbf16>, vector<2x10xf32> -> vector<2x10xf32>
    %c0_12 = arith.constant 0 : index
    %c0_13 = arith.constant 0 : index
    %28 = vector.load %arg4[%c0_12, %c0_13] : memref<1x10xf32, #tpu.memory_space<vmem>>, vector<1x10xf32>
    %29 = vector.broadcast %28 : vector<1x10xf32> to vector<2x10xf32>
    %30 = arith.addf %27, %29 : vector<2x10xf32>
    %c0_14 = arith.constant 0 : index
    %c0_15 = arith.constant 0 : index
    %31 = vector.load %arg5[%c0_14, %c0_15] : memref<2x10xf32, #tpu.memory_space<vmem>>, vector<2x10xf32>
    tpu.vector_store %arg5[%c0_14, %c0_15], %30 {strides = array<i32>} : memref<2x10xf32, #tpu.memory_space<vmem>>, vector<2x10xf32>,
    return
  }
}

</mosaic_0001>

<llo_original>
// kernel: transformer_forward.9
$region0: #{transformer_forward.9}
  #allocation0 [shape = 'u32[]', space=smem, size = 0x4, offset = 0x4, fixed_abs, tag = 'smem constant byte address 0x4 - core index']
  #allocation1 [shape = 'u32[72,128]{1,0:T(1,128)}', space=vmem, size = 0x9000, scoped, tag = 'internal scratch']
  %s0 = inlined_call_operand.vmem [shape: f32[48,32], index: 0, kind: input, shape index: {}]
  %s1 = inlined_call_operand.vmem [shape: f32[8,32], index: 1, kind: input, shape index: {}]
  %s2 = inlined_call_operand.vmem [shape: bf16[32,96], index: 2, kind: input, shape index: {}]
  %s3 = inlined_call_operand.vmem [shape: f32[1,96], index: 3, kind: input, shape index: {}]
  %s4 = inlined_call_operand.vmem [shape: bf16[48,96], index: 4, kind: output, shape index: {}]
  %s5 = sld [smem:[#allocation0]]
  $region26: #{transformer_forward.9} parent=0
    _
  %s7 = ssub.s32 1, %s5
  %s8 = scalar_select 0, %s7, %s5
  // Predicated region
  $region2: #{transformer_forward.9} parent=0 // pred_check
    _
  $region3: #{transformer_forward.9} parent=0 // pred_check_branch
    %10 = sbr.rel (0) target = $region5
  $region4: #{transformer_forward.9} parent=0 // pred_region
    _
  $region5: #{transformer_forward.9} parent=0 // pred_fallthru
    _
  // Predicated region
  $region6: #{transformer_forward.9} parent=0 // pred_check
    _
  $region7: #{transformer_forward.9} parent=0 // pred_check_branch
    %12 = sbr.rel (0) target = $region9
  $region8: #{transformer_forward.9} parent=0 // pred_region
    _
  $region9: #{transformer_forward.9} parent=0 // pred_fallthru
    _
  // Predicated region
  $region10: #{transformer_forward.9} parent=0 // pred_check
    _
  $region11: #{transformer_forward.9} parent=0 // pred_check_branch
    %14 = sbr.rel (0) target = $region13
  $region12: #{transformer_forward.9} parent=0 // pred_region
    _
  $region13: #{transformer_forward.9} parent=0 // pred_fallthru
    _
  // Predicated region
  $region14: #{transformer_forward.9} parent=0 // pred_check
    _
  $region15: #{transformer_forward.9} parent=0 // pred_check_branch
    %16 = sbr.rel (0) target = $region17
  $region16: #{transformer_forward.9} parent=0 // pred_region
    _
  $region17: #{transformer_forward.9} parent=0 // pred_fallthru
    _
  %v18 = vld [vmem:[%s0] sm:$0xff]
  %v19 = vld [vmem:[%s0 + $0x8] sm:$0xff]
  %v20 = vld [vmem:[%s0 + $0x10] sm:$0xff]
  %v21 = vld [vmem:[%s0 + $0x18] sm:$0xff]
  %v22 = vld [vmem:[%s0 + $0x20] sm:$0xff]
  %v23 = vld [vmem:[%s0 + $0x28] sm:$0xff]
  %v24 = vld [vmem:[%s1] sm:$0x1]
  %v25 = vld [vmem:[%s1 + $0x1] sm:$0x1]
  %vm26 = vcmask 261120
  %v27 = vsel %vm26, %v18, 0.0
  %28 = vadd.xlane.f32.xlu0 %v27
  %v29 = vpop.xlane.xlu0 %28
  %v30 = vsel %vm26, %v19, 0.0
  %31 = vadd.xlane.f32.xlu0 %v30
  %v32 = vpop.xlane.xlu0 %31
  %v33 = vsel %vm26, %v20, 0.0
  %34 = vadd.xlane.f32.xlu0 %v33
  %v35 = vpop.xlane.xlu0 %34
  %v36 = vsel %vm26, %v21, 0.0
  %37 = vadd.xlane.f32.xlu0 %v36
  %v38 = vpop.xlane.xlu0 %37
  %v39 = vsel %vm26, %v22, 0.0
  %40 = vadd.xlane.f32.xlu0 %v39
  %v41 = vpop.xlane.xlu0 %40
  %v42 = vsel %vm26, %v23, 0.0
  %43 = vadd.xlane.f32.xlu0 %v42
  %v44 = vpop.xlane.xlu0 %43
  %v45 = vrcp.pop 32.0
  %v46 = vmul.f32 32.0, %v45
  %v47 = vsub.f32 1.0, %v46
  %v48 = vmul.f32 %v45, %v47
  %v49 = vadd.f32 %v45, %v48
  %vm50 = vweird.f32 %v45
  %v51 = vsel %vm50, %v45, %v49
  %v52 = vmul.f32 %v29, %v51
  %v53 = vmul.f32 %v32, %v51
  %v54 = vmul.f32 %v35, %v51
  %v55 = vmul.f32 %v38, %v51
  %v56 = vmul.f32 %v41, %v51
  %v57 = vmul.f32 %v44, %v51
  %v58 = vsub.f32 %v18, %v52
  %v59 = vsub.f32 %v19, %v53
  %v60 = vsub.f32 %v20, %v54
  %v61 = vsub.f32 %v21, %v55
  %v62 = vsub.f32 %v22, %v56
  %v63 = vsub.f32 %v23, %v57
  %v64 = vmul.f32 %v58, %v58
  %v65 = vmul.f32 %v59, %v59
  %v66 = vmul.f32 %v60, %v60
  %v67 = vmul.f32 %v61, %v61
  %v68 = vmul.f32 %v62, %v62
  %v69 = vmul.f32 %v63, %v63
  %v70 = vsel %vm26, %v64, 0.0
  %71 = vadd.xlane.f32.xlu0 %v70
  %v72 = vpop.xlane.xlu0 %71
  %v73 = vsel %vm26, %v65, 0.0
  %74 = vadd.xlane.f32.xlu0 %v73
  %v75 = vpop.xlane.xlu0 %74
  %v76 = vsel %vm26, %v66, 0.0
  %77 = vadd.xlane.f32.xlu0 %v76
  %v78 = vpop.xlane.xlu0 %77
  %v79 = vsel %vm26, %v67, 0.0
  %80 = vadd.xlane.f32.xlu0 %v79
  %v81 = vpop.xlane.xlu0 %80
  %v82 = vsel %vm26, %v68, 0.0
  %83 = vadd.xlane.f32.xlu0 %v82
  %v84 = vpop.xlane.xlu0 %83
  %v85 = vsel %vm26, %v69, 0.0
  %86 = vadd.xlane.f32.xlu0 %v85
  %v87 = vpop.xlane.xlu0 %86
  %v88 = vmul.f32 %v72, %v51
  %v89 = vmul.f32 %v75, %v51
  %v90 = vmul.f32 %v78, %v51
  %v91 = vmul.f32 %v81, %v51
  %v92 = vmul.f32 %v84, %v51
  %v93 = vmul.f32 %v87, %v51
  %v94 = vadd.f32 %v88, 1e-05
  %v95 = vadd.f32 %v89, 1e-05
  %v96 = vadd.f32 %v90, 1e-05
  %v97 = vadd.f32 %v91, 1e-05
  %v98 = vadd.f32 %v92, 1e-05
  %v99 = vadd.f32 %v93, 1e-05
  %v100 = vrsqrt.pop %v94
  %v101 = vmul.f32 %v100, %v94
  %v102 = vmul.f32 %v101, %v100
  %v103 = vmul.f32 0.5, %v102
  %v104 = vsub.f32 1.5, %v103
  %v105 = vmul.f32 %v100, %v104
  %vm106 = vweird.f32 %v94
  %vm107 = vweird.f32 %v100
  %vm108 = vmor %vm106, %vm107
  %v109 = vsel %vm108, %v100, %v105
  %v110 = vrsqrt.pop %v95
  %v111 = vmul.f32 %v110, %v95
  %v112 = vmul.f32 %v111, %v110
  %v113 = vmul.f32 0.5, %v112
  %v114 = vsub.f32 1.5, %v113
  %v115 = vmul.f32 %v110, %v114
  %vm116 = vweird.f32 %v95
  %vm117 = vweird.f32 %v110
  %vm118 = vmor %vm116, %vm117
  %v119 = vsel %vm118, %v110, %v115
  %v120 = vrsqrt.pop %v96
  %v121 = vmul.f32 %v120, %v96
  %v122 = vmul.f32 %v121, %v120
  %v123 = vmul.f32 0.5, %v122
  %v124 = vsub.f32 1.5, %v123
  %v125 = vmul.f32 %v120, %v124
  %vm126 = vweird.f32 %v96
  %vm127 = vweird.f32 %v120
  %vm128 = vmor %vm126, %vm127
  %v129 = vsel %vm128, %v120, %v125
  %v130 = vrsqrt.pop %v97
  %v131 = vmul.f32 %v130, %v97
  %v132 = vmul.f32 %v131, %v130
  %v133 = vmul.f32 0.5, %v132
  %v134 = vsub.f32 1.5, %v133
  %v135 = vmul.f32 %v130, %v134
  %vm136 = vweird.f32 %v97
  %vm137 = vweird.f32 %v130
  %vm138 = vmor %vm136, %vm137
  %v139 = vsel %vm138, %v130, %v135
  %v140 = vrsqrt.pop %v98
  %v141 = vmul.f32 %v140, %v98
  %v142 = vmul.f32 %v141, %v140
  %v143 = vmul.f32 0.5, %v142
  %v144 = vsub.f32 1.5, %v143
  %v145 = vmul.f32 %v140, %v144
  %vm146 = vweird.f32 %v98
  %vm147 = vweird.f32 %v140
  %vm148 = vmor %vm146, %vm147
  %v149 = vsel %vm148, %v140, %v145
  %v150 = vrsqrt.pop %v99
  %v151 = vmul.f32 %v150, %v99
  %v152 = vmul.f32 %v151, %v150
  %v153 = vmul.f32 0.5, %v152
  %v154 = vsub.f32 1.5, %v153
  %v155 = vmul.f32 %v150, %v154
  %vm156 = vweird.f32 %v99
  %vm157 = vweird.f32 %v150
  %vm158 = vmor %vm156, %vm157
  %v159 = vsel %vm158, %v150, %v155
  %v160 = vmul.f32 %v58, %v109
  %v161 = vmul.f32 %v59, %v119
  %v162 = vmul.f32 %v60, %v129
  %v163 = vmul.f32 %v61, %v139
  %v164 = vmul.f32 %v62, %v149
  %v165 = vmul.f32 %v63, %v159
  %v166 = vperm.slane %v24, 0
  %v167 = vmul.f32 %v160, %v166
  %v168 = vmul.f32 %v161, %v166
  %v169 = vmul.f32 %v162, %v166
  %v170 = vmul.f32 %v163, %v166
  %v171 = vmul.f32 %v164, %v166
  %v172 = vmul.f32 %v165, %v166
  %v173 = vperm.slane %v25, 0
  %v174 = vadd.f32 %v167, %v173
  %v175 = vadd.f32 %v168, %v173
  %v176 = vadd.f32 %v169, %v173
  %v177 = vadd.f32 %v170, %v173
  %v178 = vadd.f32 %v171, %v173
  %v179 = vadd.f32 %v172, %v173
  %v180 = vpack.c.bf16 %v175, %v174
  %v181 = vpack.c.bf16 %v177, %v176
  %v182 = vpack.c.bf16 %v179, %v178
  %v183 = vld [vmem:[%s2] sm:$0xf]
  %v184 = vld [vmem:[%s2 + $0x4] sm:$0xf]
  %v185 = vld [vmem:[%s2 + $0x8] sm:$0xf]
  %v186 = vld [vmem:[%s2 + $0xc] sm:$0xf]
  %v187 = vld [vmem:[%s3] sm:$0x1]
  %v189 = vperm.slane %v187, 0
  %v195 = vunpack.c.l.b16 %v183
  %v196 = vunpack.c.l.b16 %v184
  %v197 = vunpack.c.l.b16 %v185
  %v198 = vunpack.c.l.b16 %v186
  %v199 = vpack.c.b16 %v196, %v195
  %v200 = vpack.c.b16 %v198, %v197
  %v204 = vsel %vm26, %v180, 0
  %v207 = vsel %vm26, %v181, 0
  %v210 = vsel %vm26, %v182, 0
  %212 = vmatpush.bf16.msra.mxu0 0
  %213 = vmatpush.bf16.msra.mxu0 0
  %214 = vmatpush.bf16.msra.mxu0 0
  %215 = vmatpush.bf16.msra.mxu0 0
  %216 = vmatpush.bf16.msra.mxu0 0
  %217 = vmatpush.bf16.msra.mxu0 0
  %218 = vmatpush.bf16.msra.mxu0 %v200
  %219 = vmatpush.bf16.msra.mxu0 %v199
  %220 = vmatmul.bf16.gmra.mxu0 %v204
  %v221 = vpop.f32.mrf.mxu0
  %v222 = vadd.f32 %v189, %v221
  %v223 = vpop.f32.mrf.mxu0
  %v224 = vadd.f32 %v189, %v223
  %225 = vmatmul.bf16.gmra.mxu0 %v207
  %v226 = vpop.f32.mrf.mxu0
  %v227 = vadd.f32 %v189, %v226
  %v228 = vpop.f32.mrf.mxu0
  %v229 = vadd.f32 %v189, %v228
  %230 = vmatmul.bf16.gmra.mxu0 %v210
  %v231 = vpop.f32.mrf.mxu0
  %v232 = vadd.f32 %v189, %v231
  %v233 = vpop.f32.mrf.mxu0
  %v234 = vadd.f32 %v189, %v233
  %235 = vdwg.mxu0
  %v236 = vpack.c.bf16 %v222, %v222
  %v237 = vpack.c.bf16 %v224, %v224
  %v238 = vpack.c.bf16 %v227, %v227
  %v239 = vpack.c.bf16 %v229, %v229
  %v240 = vpack.c.bf16 %v232, %v232
  %v241 = vpack.c.bf16 %v234, %v234
  %vm242 = vcmask 781312
  %243 = vst.msk [vmem:[%s4] sm:$0xf] %vm242, %v236
  %244 = vst.msk [vmem:[%s4 + $0x4] sm:$0xf] %vm242, %v237
  %245 = vst.msk [vmem:[%s4 + $0x8] sm:$0xf] %vm242, %v238
  %246 = vst.msk [vmem:[%s4 + $0xc] sm:$0xf] %vm242, %v239
  %247 = vst.msk [vmem:[%s4 + $0x10] sm:$0xf] %vm242, %v240
  %248 = vst.msk [vmem:[%s4 + $0x14] sm:$0xf] %vm242, %v241
  // Predicated region
  $region18: #{transformer_forward.9} parent=0 // pred_check
    _
  $region19: #{transformer_forward.9} parent=0 // pred_check_branch
    %250 = sbr.rel (0) target = $region21
  $region20: #{transformer_forward.9} parent=0 // pred_region
    _
  $region21: #{transformer_forward.9} parent=0 // pred_fallthru
    _
  // Predicated region
  $region22: #{transformer_forward.9} parent=0 // pred_check
    _
  $region23: #{transformer_forward.9} parent=0 // pred_check_branch
    %252 = sbr.rel (0) target = $region25
  $region24: #{transformer_forward.9} parent=0 // pred_region
    _
  $region25: #{transformer_forward.9} parent=0 // pred_fallthru
    _

// kernel: transformer_forward.10
$region0: #{transformer_forward.10}
  #allocation0 [shape = 'u32[]', space=smem, size = 0x4, offset = 0x4, fixed_abs, tag = 'smem constant byte address 0x4 - core index']
  #allocation1 [shape = 'u32[72,128]{1,0:T(1,128)}', space=vmem, size = 0x9000, scoped, tag = 'internal scratch']
  %s0 = inlined_call_operand.vmem [shape: bf16[8,24,8], index: 0, kind: input, shape index: {}]
  %s1 = inlined_call_operand.vmem [shape: bf16[8,24,8], index: 1, kind: input, shape index: {}]
  %s2 = inlined_call_operand.vmem [shape: bf16[8,24,8], index: 2, kind: input, shape index: {}]
  %s3 = inlined_call_operand.vmem [shape: bf16[8,24,8], index: 3, kind: output, shape index: {}]
  %s4 = sld [smem:[#allocation0]]
  $region45: #{transformer_forward.10} parent=0
    _
  %s6 = ssub.s32 1, %s4
  %s7 = scalar_select 0, %s6, %s4
  loop: start=0, step=1, limit=10
  $region2: #{transformer_forward.10} parent=0 // loop_pre_header
    _
  $region3: #{transformer_forward.10} parent=0 // loop_header
    %s9 = sphi 0, %s13
    %p10 = scmp.ge.s32.totalorder %s9, 10
    %s19 = sphi 0, %s21
    %s22 = sphi 0, %s19
    %s23 = sphi 0, %s22
    %s39 = sphi 0, %s23
    %s45 = sphi 0, %s47
    %s48 = sphi 0, %s45
    %s49 = sphi 0, %s48
    %s65 = sphi 0, %s49
    %s71 = sphi 0, %s73
    %s74 = sphi 0, %s71
    %s75 = sphi 0, %s74
    %s91 = sphi 0, %s75
    %s97 = sphi 0, %s99
    %s100 = sphi 0, %s97
    %s101 = sphi 0, %s100
    %s117 = sphi 0, %s101
  $region4: #{transformer_forward.10} parent=0 // loop_header_branch
    %12 = sbr.rel (%p10) target = $region8
  $region5: #{transformer_forward.10} parent=0 // loop_body
    %s14 = ssub.s32 %s9, 1
    %s15 = ssub.s32 %s9, 2
    %s16 = sadd.s32 %s9, 1
    %s17 = ssub.s32 %s9, %s16
    %p18 = scmp.eq.s32.totalorder %s17, 0
    %s20 = sadd.s32 %s19, 1
    %s21 = scalar_select %p18, %s19, %s20
    %p24 = pneg %p18
    %p25 = scmp.eq.s32.totalorder %s9, 7
    %p26 = por %p24, %p25
    %p27 = scmp.ne.s32.totalorder %s19, %s22
    %p28 = scmp.eq.s32.totalorder %s9, 0
    %p29 = por %p27, %p28
    %p30 = scmp.ne.s32.totalorder %s19, %s22
    %p31 = scmp.eq.s32.totalorder %s14, 7
    %p32 = por %p30, %p31
    %p33 = scmp.ne.s32.totalorder %s22, %s23
    %p34 = scmp.eq.s32.totalorder %s14, 0
    %p35 = por %p33, %p34
    %p36 = scmp.ne.s32.totalorder %s22, %s23
    %p37 = scmp.eq.s32.totalorder %s15, 7
    %p38 = por %p36, %p37
    %p40 = scmp.ne.s32.totalorder %s23, %s39
    %p41 = scmp.eq.s32.totalorder %s15, 0
    %p42 = por %p40, %p41
    %s43 = ssub.s32 %s9, %s16
    %p44 = scmp.eq.s32.totalorder %s43, 0
    %s46 = sadd.s32 %s45, 1
    %s47 = scalar_select %p44, %s45, %s46
    %p50 = pneg %p44
    %p51 = scmp.eq.s32.totalorder %s9, 7
    %p52 = por %p50, %p51
    %p53 = scmp.ne.s32.totalorder %s45, %s48
    %p54 = scmp.eq.s32.totalorder %s9, 0
    %p55 = por %p53, %p54
    %p56 = scmp.ne.s32.totalorder %s45, %s48
    %p57 = scmp.eq.s32.totalorder %s14, 7
    %p58 = por %p56, %p57
    %p59 = scmp.ne.s32.totalorder %s48, %s49
    %p60 = scmp.eq.s32.totalorder %s14, 0
    %p61 = por %p59, %p60
    %p62 = scmp.ne.s32.totalorder %s48, %s49
    %p63 = scmp.eq.s32.totalorder %s15, 7
    %p64 = por %p62, %p63
    %p66 = scmp.ne.s32.totalorder %s49, %s65
    %p67 = scmp.eq.s32.totalorder %s15, 0
    %p68 = por %p66, %p67
    %s69 = ssub.s32 %s9, %s16
    %p70 = scmp.eq.s32.totalorder %s69, 0
    %s72 = sadd.s32 %s71, 1
    %s73 = scalar_select %p70, %s71, %s72
    %p76 = pneg %p70
    %p77 = scmp.eq.s32.totalorder %s9, 7
    %p78 = por %p76, %p77
    %p79 = scmp.ne.s32.totalorder %s71, %s74
    %p80 = scmp.eq.s32.totalorder %s9, 0
    %p81 = por %p79, %p80
    %p82 = scmp.ne.s32.totalorder %s71, %s74
    %p83 = scmp.eq.s32.totalorder %s14, 7
    %p84 = por %p82, %p83
    %p85 = scmp.ne.s32.totalorder %s74, %s75
    %p86 = scmp.eq.s32.totalorder %s14, 0
    %p87 = por %p85, %p86
    %p88 = scmp.ne.s32.totalorder %s74, %s75
    %p89 = scmp.eq.s32.totalorder %s15, 7
    %p90 = por %p88, %p89
    %p92 = scmp.ne.s32.totalorder %s75, %s91
    %p93 = scmp.eq.s32.totalorder %s15, 0
    %p94 = por %p92, %p93
    %s95 = ssub.s32 %s9, %s16
    %p96 = scmp.eq.s32.totalorder %s95, 0
    %s98 = sadd.s32 %s97, 1
    %s99 = scalar_select %p96, %s97, %s98
    %p102 = pneg %p96
    %p103 = scmp.eq.s32.totalorder %s9, 7
    %p104 = por %p102, %p103
    %p105 = scmp.ne.s32.totalorder %s97, %s100
    %p106 = scmp.eq.s32.totalorder %s9, 0
    %p107 = por %p105, %p106
    %p108 = scmp.ne.s32.totalorder %s97, %s100
    %p109 = scmp.eq.s32.totalorder %s14, 7
    %p110 = por %p108, %p109
    %p111 = scmp.ne.s32.totalorder %s100, %s101
    %p112 = scmp.eq.s32.totalorder %s14, 0
    %p113 = por %p111, %p112
    %p114 = scmp.ne.s32.totalorder %s100, %s101
    %p115 = scmp.eq.s32.totalorder %s15, 7
    %p116 = por %p114, %p115
    %p118 = scmp.ne.s32.totalorder %s101, %s117
    %p119 = scmp.eq.s32.totalorder %s15, 0
    %p120 = por %p118, %p119
    %p121 = scmp.le.s32.totalorder 1, %s9
    %p122 = scmp.lt.s32.totalorder %s9, 9
    %p123 = pnand %p121, %p122
    %p124 = pneg %p123
    // Predicated region
    $region9: #{transformer_forward.10} parent=5 // pred_check
      _
    $region10: #{transformer_forward.10} parent=5 // pred_check_branch
      %126 = sbr.rel (%p123) target = $region12
    $region11: #{transformer_forward.10} parent=5 // pred_region
      %s127 = ssub.s32 %s9, 1
    $region12: #{transformer_forward.10} parent=5 // pred_fallthru
      _
    %p128 = scmp.lt.s32.totalorder %s9, 8
    // Predicated region
    $region13: #{transformer_forward.10} parent=5 // pred_check
      %p129 = pneg %p128
    $region14: #{transformer_forward.10} parent=5 // pred_check_branch
      %131 = sbr.rel (%p129) target = $region16
    $region15: #{transformer_forward.10} parent=5 // pred_region
      // Predicated region
      $region17: #{transformer_forward.10} parent=15 // pred_check
        %p132 = pneg %p29
      $region18: #{transformer_forward.10} parent=15 // pred_check_branch
        %134 = sbr.rel (%p132) target = $region20
      $region19: #{transformer_forward.10} parent=15 // pred_region
        %p135 = scmp.lt.s32.totalorder %s9, 7
        %s136 = scalar_select %p135, %s9, 7
        %s137 = smul.addr %s136, 3
        %s138 = smul.addr %s137, 4
        %s139 = scalar_lea.vmem %s0, %s138
      $region20: #{transformer_forward.10} parent=15 // pred_fallthru
        _
      // Predicated region
      $region21: #{transformer_forward.10} parent=15 // pred_check
        %p140 = pneg %p55
      $region22: #{transformer_forward.10} parent=15 // pred_check_branch
        %142 = sbr.rel (%p140) target = $region24
      $region23: #{transformer_forward.10} parent=15 // pred_region
        %p143 = scmp.lt.s32.totalorder %s9, 7
        %s144 = scalar_select %p143, %s9, 7
        %s145 = smul.addr %s144, 3
        %s146 = smul.addr %s145, 4
        %s147 = scalar_lea.vmem %s1, %s146
      $region24: #{transformer_forward.10} parent=15 // pred_fallthru
        _
      // Predicated region
      $region25: #{transformer_forward.10} parent=15 // pred_check
        %p148 = pneg %p81
      $region26: #{transformer_forward.10} parent=15 // pred_check_branch
        %150 = sbr.rel (%p148) target = $region28
      $region27: #{transformer_forward.10} parent=15 // pred_region
        %p151 = scmp.lt.s32.totalorder %s9, 7
        %s152 = scalar_select %p151, %s9, 7
        %s153 = smul.addr %s152, 3
        %s154 = smul.addr %s153, 4
        %s155 = scalar_lea.vmem %s2, %s154
      $region28: #{transformer_forward.10} parent=15 // pred_fallthru
        _
    $region16: #{transformer_forward.10} parent=5 // pred_fallthru
      _
    %p156 = scmp.le.s32.totalorder 1, %s9
    %p157 = scmp.lt.s32.totalorder %s9, 9
    %p158 = pnand %p156, %p157
    %p159 = pneg %p158
    // Predicated region
    $region29: #{transformer_forward.10} parent=5 // pred_check
      _
    $region30: #{transformer_forward.10} parent=5 // pred_check_branch
      %161 = sbr.rel (%p158) target = $region32
    $region31: #{transformer_forward.10} parent=5 // pred_region
      %s162 = ssub.s32 %s9, 1
      %p163 = scmp.lt.s32.totalorder %s14, 7
      %s164 = scalar_select %p163, %s14, 7
      %s165 = smul.addr %s164, 3
      %s166 = smul.addr %s165, 4
      %s167 = scalar_lea.vmem %s0, %s166
      %p168 = pneg %p35
      %p169 = pneg %p32
      %p170 = scmp.lt.s32.totalorder %s14, 7
      %s171 = scalar_select %p170, %s14, 7
      %s172 = smul.addr %s171, 3
      %s173 = smul.addr %s172, 4
      %s174 = scalar_lea.vmem %s1, %s173
      %p175 = pneg %p61
      %p176 = pneg %p58
      %p177 = scmp.lt.s32.totalorder %s14, 7
      %s178 = scalar_select %p177, %s14, 7
      %s179 = smul.addr %s178, 3
      %s180 = smul.addr %s179, 4
      %s181 = scalar_lea.vmem %s2, %s180
      %p182 = pneg %p87
      %p183 = pneg %p84
      %p184 = pneg %p113
      %p185 = pneg %p110
      %p186 = scmp.lt.s32.totalorder %s14, 7
      %s187 = scalar_select %p186, %s14, 7
      %s188 = smul.addr %s187, 3
      %s189 = smul.addr %s188, 4
      %s190 = scalar_lea.vmem %s3, %s189
      %p191 = scmp.lt.s32.totalorder %s14, 7
      %s192 = scalar_select %p191, %s14, 7
      %s193 = smul.addr %s192, 3
      %s194 = smul.addr %s193, 4
      %s195 = scalar_lea.vmem %s0, %s194
      %p196 = scmp.lt.s32.totalorder %s14, 7
      %s197 = scalar_select %p196, %s14, 7
      %s198 = smul.addr %s197, 3
      %s199 = smul.addr %s198, 4
      %s200 = scalar_lea.vmem %s1, %s199
      %p201 = scmp.lt.s32.totalorder %s14, 7
      %s202 = scalar_select %p201, %s14, 7
      %s203 = smul.addr %s202, 3
      %s204 = smul.addr %s203, 4
      %s205 = scalar_lea.vmem %s2, %s204
      %p206 = scmp.lt.s32.totalorder %s14, 7
      %s207 = scalar_select %p206, %s14, 7
      %s208 = smul.addr %s207, 3
      %s209 = smul.addr %s208, 4
      %s210 = scalar_lea.vmem %s3, %s209
      %v212 = vld [vmem:[%s195] sm:$0xf]
      %v213 = vld [vmem:[%s195 + $0x4] sm:$0xf]
      %v214 = vld [vmem:[%s195 + $0x8] sm:$0xf]
      %v215 = vld [vmem:[%s200] sm:$0xf]
      %v216 = vld [vmem:[%s200 + $0x4] sm:$0xf]
      %v217 = vld [vmem:[%s200 + $0x8] sm:$0xf]
      %v218 = vld [vmem:[%s205] sm:$0xf]
      %v219 = vld [vmem:[%s205 + $0x4] sm:$0xf]
      %v220 = vld [vmem:[%s205 + $0x8] sm:$0xf]
      %v224 = vunpack.c.l.b16 %v212
      %v225 = vunpack.c.l.b16 %v213
      %v226 = vunpack.c.l.b16 %v214
      %v227 = vpack.c.b16 %v225, %v224
      %v228 = vpack.c.b16 %v226, %v226
      %v232 = vunpack.c.l.b16 %v215
      %v233 = vunpack.c.l.b16 %v216
      %v234 = vunpack.c.l.b16 %v217
      %v235 = vpack.c.b16 %v233, %v232
      %v236 = vpack.c.b16 %v234, %v234
      %vm237 = vcmask 64512
      %v239 = vsel %vm237, %v227, 0
      %v242 = vsel %vm237, %v228, 0
      %v245 = vsel %vm237, %v235, 0
      %v248 = vsel %vm237, %v236, 0
      %250 = vmatpush.bf16.xpose.msra.mxu0 0
      %251 = vmatpush.bf16.xpose.msra.mxu0 0
      %252 = vmatpush.bf16.xpose.msra.mxu0 0
      %253 = vmatpush.bf16.xpose.msra.mxu0 0
      %254 = vmatpush.bf16.xpose.msra.mxu0 0
      %255 = vmatpush.bf16.xpose.msra.mxu0 0
      %256 = vmatpush.bf16.xpose.msra.mxu0 %v248
      %257 = vmatpush.bf16.xpose.msra.mxu0 %v245
      %258 = vmatmul.bf16.gmra.mxu0 %v239
      %v259 = vpop.f32.mrf.mxu0
      %v260 = vadd.f32 0.0, %v259
      %v261 = vpop.f32.mrf.mxu0
      %v262 = vadd.f32 0.0, %v261
      %263 = vmatmul.bf16.gmra.mxu0 %v242
      %v264 = vpop.f32.mrf.mxu0
      %v265 = vadd.f32 0.0, %v264
      %v266 = vpop.f32.mrf.mxu0
      %267 = vdwg.mxu0
      %v268 = vlaneseq
      %v269 = vand.u32 %v268, 127
      %vm270 = vcmp.lt.s32.totalorder %v269, 17
      %v271 = vsel %vm270, %v260, -1e+30
      %v272 = vsel %vm270, %v262, -1e+30
      %v273 = vsel %vm270, %v265, -1e+30
      %vm274 = vcmask 195584
      %v275 = vsel %vm274, %v271, -inf
      %276 = vmax.xlane.f32.xlu0 %v275
      %v277 = vpop.xlane.xlu0 %276
      %v278 = vsel %vm274, %v272, -inf
      %279 = vmax.xlane.f32.xlu0 %v278
      %v280 = vpop.xlane.xlu0 %279
      %v281 = vsel %vm274, %v273, -inf
      %282 = vmax.xlane.f32.xlu0 %v281
      %v283 = vpop.xlane.xlu0 %282
      %v284 = vsub.f32 %v271, %v277
      %v285 = vsub.f32 %v272, %v280
      %v286 = vsub.f32 %v273, %v283
      %v287 = vmul.f32 %v284, 1.442695
      %v288 = vpow.pop %v287
      %v289 = vmul.f32 %v285, 1.442695
      %v290 = vpow.pop %v289
      %v291 = vmul.f32 %v286, 1.442695
      %v292 = vpow.pop %v291
      %v293 = vsel %vm274, %v288, 0.0
      %294 = vadd.xlane.f32.xlu0 %v293
      %v295 = vpop.xlane.xlu0 %294
      %v296 = vsel %vm274, %v290, 0.0
      %297 = vadd.xlane.f32.xlu0 %v296
      %v298 = vpop.xlane.xlu0 %297
      %v299 = vsel %vm274, %v292, 0.0
      %300 = vadd.xlane.f32.xlu0 %v299
      %v301 = vpop.xlane.xlu0 %300
      %v302 = vrcp.pop %v295
      %v303 = vrcp.pop %v298
      %v304 = vrcp.pop %v301
      %v305 = vmul.f32 %v288, %v302
      %v306 = vmul.f32 %v290, %v303
      %v307 = vmul.f32 %v292, %v304
      %v308 = vpack.c.bf16 %v306, %v305
      %v309 = vpack.c.bf16 %v307, %v307
      %v313 = vunpack.c.l.b16 %v218
      %v314 = vunpack.c.l.b16 %v219
      %v315 = vunpack.c.l.b16 %v220
      %v316 = vpack.c.b16 %v314, %v313
      %v317 = vpack.c.b16 %v315, %v315
      %v320 = vsel %vm274, %v308, 0
      %v323 = vsel %vm274, %v309, 0
      %vm325 = vcmask 1043456
      %v327 = vsel %vm325, %v317, 0
      %329 = vmatpush.bf16.msra.mxu0 0
      %330 = vmatpush.bf16.msra.mxu0 0
      %331 = vmatpush.bf16.msra.mxu0 0
      %332 = vmatpush.bf16.msra.mxu0 0
      %333 = vmatpush.bf16.msra.mxu0 0
      %334 = vmatpush.bf16.msra.mxu0 0
      %335 = vmatpush.bf16.msra.mxu0 %v327
      %336 = vmatpush.bf16.msra.mxu0 %v316
      %337 = vmatmul.bf16.gmra.mxu0 %v320
      %v338 = vpop.f32.mrf.mxu0
      %v339 = vadd.f32 0.0, %v338
      %v340 = vpop.f32.mrf.mxu0
      %v341 = vadd.f32 0.0, %v340
      %342 = vmatmul.bf16.gmra.mxu0 %v323
      %v343 = vpop.f32.mrf.mxu0
      %v344 = vadd.f32 0.0, %v343
      %v345 = vpop.f32.mrf.mxu0
      %346 = vdwg.mxu0
      %v347 = vpack.c.bf16 %v339, %v339
      %v348 = vpack.c.bf16 %v341, %v341
      %v349 = vpack.c.bf16 %v344, %v344
      %vm350 = vcmask 60416
      %351 = vst.msk [vmem:[%s210] sm:$0xf] %vm350, %v347
      %352 = vst.msk [vmem:[%s210 + $0x4] sm:$0xf] %vm350, %v348
      %353 = vst.msk [vmem:[%s210 + $0x8] sm:$0xf] %vm350, %v349
      %p354 = scmp.lt.s32.totalorder %s14, 7
      %s355 = scalar_select %p354, %s14, 7
      %s356 = smul.addr %s355, 3
      %s357 = smul.addr %s356, 4
      %s358 = scalar_lea.vmem %s3, %s357
      // Predicated region
      $region33: #{transformer_forward.10} parent=31 // pred_check
        %p359 = pneg %p110
      $region34: #{transformer_forward.10} parent=31 // pred_check_branch
        %361 = sbr.rel (%p359) target = $region36
      $region35: #{transformer_forward.10} parent=31 // pred_region
        _
      $region36: #{transformer_forward.10} parent=31 // pred_fallthru
        _
    $region32: #{transformer_forward.10} parent=5 // pred_fallthru
      _
    %p362 = scmp.le.s32.totalorder 2, %s9
    // Predicated region
    $region37: #{transformer_forward.10} parent=5 // pred_check
      %p363 = pneg %p362
    $region38: #{transformer_forward.10} parent=5 // pred_check_branch
      %365 = sbr.rel (%p363) target = $region40
    $region39: #{transformer_forward.10} parent=5 // pred_region
      %s366 = ssub.s32 %s9, 2
      // Predicated region
      $region41: #{transformer_forward.10} parent=39 // pred_check
        %p367 = pneg %p116
      $region42: #{transformer_forward.10} parent=39 // pred_check_branch
        %369 = sbr.rel (%p367) target = $region44
      $region43: #{transformer_forward.10} parent=39 // pred_region
        %p370 = scmp.lt.s32.totalorder %s15, 7
        %s371 = scalar_select %p370, %s15, 7
        %s372 = smul.addr %s371, 3
        %s373 = smul.addr %s372, 4
        %s374 = scalar_lea.vmem %s3, %s373
      $region44: #{transformer_forward.10} parent=39 // pred_fallthru
        _
    $region40: #{transformer_forward.10} parent=5 // pred_fallthru
      _
  $region6: #{transformer_forward.10} parent=0 // loop_footer
    %s13 = sadd.s32 1, %s9
  $region7: #{transformer_forward.10} parent=0 // loop_footer_branch
    %8 = sbr.rel target = $region3
  $region8: #{transformer_forward.10} parent=0 // loop_exit
    _

// kernel: transformer_forward.8
$region0: #{transformer_forward.8}
  #allocation0 [shape = 'u32[]', space=smem, size = 0x4, offset = 0x4, fixed_abs, tag = 'smem constant byte address 0x4 - core index']
  #allocation1 [shape = 'u32[72,128]{1,0:T(1,128)}', space=vmem, size = 0x9000, scoped, tag = 'internal scratch']
  #allocation2 [shape = 'f32[32,32]{1,0:T(8,128)}', space=vmem, size = 0x4000, scoped, tag = 'scratch operand']
  %s0 = inlined_call_operand.vmem [shape: f32[32,64], index: 0, kind: input, shape index: {}]
  %s1 = inlined_call_operand.vmem [shape: bf16[64,32], index: 1, kind: input, shape index: {}]
  %s2 = inlined_call_operand.vmem [shape: f32[1,32], index: 2, kind: input, shape index: {}]
  %s3 = inlined_call_operand.vmem [shape: f32[32,32], index: 3, kind: output, shape index: {}]
  %s4 = sld [smem:[#allocation0]]
  $region30: #{transformer_forward.8} parent=0
    _
  %s6 = ssub.s32 1, %s4
  %s7 = scalar_select 0, %s6, %s4
  // Predicated region
  $region2: #{transformer_forward.8} parent=0 // pred_check
    _
  $region3: #{transformer_forward.8} parent=0 // pred_check_branch
    %9 = sbr.rel (0) target = $region5
  $region4: #{transformer_forward.8} parent=0 // pred_region
    _
  $region5: #{transformer_forward.8} parent=0 // pred_fallthru
    _
  // Predicated region
  $region6: #{transformer_forward.8} parent=0 // pred_check
    _
  $region7: #{transformer_forward.8} parent=0 // pred_check_branch
    %11 = sbr.rel (0) target = $region9
  $region8: #{transformer_forward.8} parent=0 // pred_region
    _
  $region9: #{transformer_forward.8} parent=0 // pred_fallthru
    _
  // Predicated region
  $region10: #{transformer_forward.8} parent=0 // pred_check
    _
  $region11: #{transformer_forward.8} parent=0 // pred_check_branch
    %13 = sbr.rel (0) target = $region13
  $region12: #{transformer_forward.8} parent=0 // pred_region
    _
  $region13: #{transformer_forward.8} parent=0 // pred_fallthru
    _
  %p15 = scmp.eq.s32.totalorder 0, 0
  // Predicated region
  $region14: #{transformer_forward.8} parent=0 // pred_check
    %p16 = pneg %p15
  $region15: #{transformer_forward.8} parent=0 // pred_check_branch
    %18 = sbr.rel (%p16) target = $region17
  $region16: #{transformer_forward.8} parent=0 // pred_region
    %vm19 = vcmask 261120
    %20 = vst.msk [vmem:[#allocation2] sm:$0xff] %vm19, 0.0
    %21 = vst.msk [vmem:[#allocation2 + $0x8] sm:$0xff] %vm19, 0.0
    %22 = vst.msk [vmem:[#allocation2 + $0x10] sm:$0xff] %vm19, 0.0
    %23 = vst.msk [vmem:[#allocation2 + $0x18] sm:$0xff] %vm19, 0.0
  $region17: #{transformer_forward.8} parent=0 // pred_fallthru
    _
  %v24 = vld [vmem:[#allocation2] sm:$0xff]
  %v25 = vld [vmem:[#allocation2 + $0x8] sm:$0xff]
  %v26 = vld [vmem:[#allocation2 + $0x10] sm:$0xff]
  %v27 = vld [vmem:[#allocation2 + $0x18] sm:$0xff]
  %v28 = vld [vmem:[%s0] sm:$0xff]
  %v29 = vld [vmem:[%s0 + $0x8] sm:$0xff]
  %v30 = vld [vmem:[%s0 + $0x10] sm:$0xff]
  %v31 = vld [vmem:[%s0 + $0x18] sm:$0xff]
  %v32 = vpack.c.bf16 %v29, %v28
  %v33 = vpack.c.bf16 %v31, %v30
  %v34 = vld [vmem:[%s1] sm:$0xf]
  %v35 = vld [vmem:[%s1 + $0x4] sm:$0xf]
  %v36 = vld [vmem:[%s1 + $0x8] sm:$0xf]
  %v37 = vld [vmem:[%s1 + $0xc] sm:$0xf]
  %v38 = vld [vmem:[%s1 + $0x10] sm:$0xf]
  %v39 = vld [vmem:[%s1 + $0x14] sm:$0xf]
  %v40 = vld [vmem:[%s1 + $0x18] sm:$0xf]
  %v41 = vld [vmem:[%s1 + $0x1c] sm:$0xf]
  %v50 = vunpack.c.l.b16 %v34
  %v51 = vunpack.c.l.b16 %v35
  %v52 = vunpack.c.l.b16 %v36
  %v53 = vunpack.c.l.b16 %v37
  %v54 = vunpack.c.l.b16 %v38
  %v55 = vunpack.c.l.b16 %v39
  %v56 = vunpack.c.l.b16 %v40
  %v57 = vunpack.c.l.b16 %v41
  %v58 = vpack.c.b16 %v51, %v50
  %v59 = vpack.c.b16 %v53, %v52
  %v60 = vpack.c.b16 %v55, %v54
  %v61 = vpack.c.b16 %v57, %v56
  %vm66 = vcmask 523264
  %v68 = vsel %vm66, %v32, 0
  %v71 = vsel %vm66, %v33, 0
  %73 = vmatpush.bf16.msra.mxu0 0
  %74 = vmatpush.bf16.msra.mxu0 0
  %75 = vmatpush.bf16.msra.mxu0 0
  %76 = vmatpush.bf16.msra.mxu0 0
  %77 = vmatpush.bf16.msra.mxu0 %v61
  %78 = vmatpush.bf16.msra.mxu0 %v60
  %79 = vmatpush.bf16.msra.mxu0 %v59
  %80 = vmatpush.bf16.msra.mxu0 %v58
  %81 = vmatmul.bf16.gmra.mxu0 %v68
  %v82 = vpop.f32.mrf.mxu0
  %v83 = vadd.f32 0.0, %v82
  %v84 = vpop.f32.mrf.mxu0
  %v85 = vadd.f32 0.0, %v84
  %86 = vmatmul.bf16.gmra.mxu0 %v71
  %v87 = vpop.f32.mrf.mxu0
  %v88 = vadd.f32 0.0, %v87
  %v89 = vpop.f32.mrf.mxu0
  %v90 = vadd.f32 0.0, %v89
  %91 = vdwg.mxu0
  %v92 = vadd.f32 %v24, %v83
  %v93 = vadd.f32 %v25, %v85
  %v94 = vadd.f32 %v26, %v88
  %v95 = vadd.f32 %v27, %v90
  %vm96 = vcmask 261120
  %97 = vst.msk [vmem:[#allocation2] sm:$0xff] %vm96, %v92
  %98 = vst.msk [vmem:[#allocation2 + $0x8] sm:$0xff] %vm96, %v93
  %99 = vst.msk [vmem:[#allocation2 + $0x10] sm:$0xff] %vm96, %v94
  %100 = vst.msk [vmem:[#allocation2 + $0x18] sm:$0xff] %vm96, %v95
  // Predicated region
  $region18: #{transformer_forward.8} parent=0 // pred_check
    %p101 = pneg %p15
  $region19: #{transformer_forward.8} parent=0 // pred_check_branch
    %103 = sbr.rel (%p101) target = $region21
  $region20: #{transformer_forward.8} parent=0 // pred_region
    %v104 = vld [vmem:[#allocation2] sm:$0xff]
    %v105 = vld [vmem:[#allocation2 + $0x8] sm:$0xff]
    %v106 = vld [vmem:[#allocation2 + $0x10] sm:$0xff]
    %v107 = vld [vmem:[#allocation2 + $0x18] sm:$0xff]
    %v108 = vld [vmem:[%s2] sm:$0x1]
    %v110 = vperm.slane %v108, 0
    %v112 = vadd.f32 %v104, %v110
    %v113 = vadd.f32 %v105, %v110
    %v114 = vadd.f32 %v106, %v110
    %v115 = vadd.f32 %v107, %v110
    %116 = vst.msk [vmem:[%s3] sm:$0xff] %vm96, %v112
    %117 = vst.msk [vmem:[%s3 + $0x8] sm:$0xff] %vm96, %v113
    %118 = vst.msk [vmem:[%s3 + $0x10] sm:$0xff] %vm96, %v114
    %119 = vst.msk [vmem:[%s3 + $0x18] sm:$0xff] %vm96, %v115
  $region21: #{transformer_forward.8} parent=0 // pred_fallthru
    _
  // Predicated region
  $region22: #{transformer_forward.8} parent=0 // pred_check
    _
  $region23: #{transformer_forward.8} parent=0 // pred_check_branch
    %121 = sbr.rel (0) target = $region25
  $region24: #{transformer_forward.8} parent=0 // pred_region
    _
  $region25: #{transformer_forward.8} parent=0 // pred_fallthru
    _
  // Predicated region
  $region26: #{transformer_forward.8} parent=0 // pred_check
    _
  $region27: #{transformer_forward.8} parent=0 // pred_check_branch
    %123 = sbr.rel (0) target = $region29
  $region28: #{transformer_forward.8} parent=0 // pred_region
    _
  $region29: #{transformer_forward.8} parent=0 // pred_fallthru
    _

// kernel: transformer_forward.11
$region0: #{transformer_forward.11}
  #allocation0 [shape = 'u32[]', space=smem, size = 0x4, offset = 0x4, fixed_abs, tag = 'smem constant byte address 0x4 - core index']
  #allocation1 [shape = 'u32[72,128]{1,0:T(1,128)}', space=vmem, size = 0x9000, scoped, tag = 'internal scratch']
  %s0 = inlined_call_operand.vmem [shape: f32[48,32], index: 0, kind: input, shape index: {}]
  %s1 = inlined_call_operand.vmem [shape: bf16[48,32], index: 1, kind: input, shape index: {}]
  %s2 = inlined_call_operand.vmem [shape: f32[8,32], index: 2, kind: input, shape index: {}]
  %s3 = inlined_call_operand.vmem [shape: bf16[32,32], index: 3, kind: input, shape index: {}]
  %s4 = inlined_call_operand.vmem [shape: bf16[32,64], index: 4, kind: input, shape index: {}]
  %s5 = inlined_call_operand.vmem [shape: f32[1,64], index: 5, kind: input, shape index: {}]
  %s6 = inlined_call_operand.vmem [shape: bf16[64,32], index: 6, kind: input, shape index: {}]
  %s7 = inlined_call_operand.vmem [shape: f32[48,32], index: 7, kind: output, shape index: {}]
  %s8 = sld [smem:[#allocation0]]
  $region38: #{transformer_forward.11} parent=0
    _
  %s10 = ssub.s32 1, %s8
  %s11 = scalar_select 0, %s10, %s8
  // Predicated region
  $region2: #{transformer_forward.11} parent=0 // pred_check
    _
  $region3: #{transformer_forward.11} parent=0 // pred_check_branch
    %13 = sbr.rel (0) target = $region5
  $region4: #{transformer_forward.11} parent=0 // pred_region
    _
  $region5: #{transformer_forward.11} parent=0 // pred_fallthru
    _
  // Predicated region
  $region6: #{transformer_forward.11} parent=0 // pred_check
    _
  $region7: #{transformer_forward.11} parent=0 // pred_check_branch
    %15 = sbr.rel (0) target = $region9
  $region8: #{transformer_forward.11} parent=0 // pred_region
    _
  $region9: #{transformer_forward.11} parent=0 // pred_fallthru
    _
  // Predicated region
  $region10: #{transformer_forward.11} parent=0 // pred_check
    _
  $region11: #{transformer_forward.11} parent=0 // pred_check_branch
    %17 = sbr.rel (0) target = $region13
  $region12: #{transformer_forward.11} parent=0 // pred_region
    _
  $region13: #{transformer_forward.11} parent=0 // pred_fallthru
    _
  // Predicated region
  $region14: #{transformer_forward.11} parent=0 // pred_check
    _
  $region15: #{transformer_forward.11} parent=0 // pred_check_branch
    %19 = sbr.rel (0) target = $region17
  $region16: #{transformer_forward.11} parent=0 // pred_region
    _
  $region17: #{transformer_forward.11} parent=0 // pred_fallthru
    _
  // Predicated region
  $region18: #{transformer_forward.11} parent=0 // pred_check
    _
  $region19: #{transformer_forward.11} parent=0 // pred_check_branch
    %21 = sbr.rel (0) target = $region21
  $region20: #{transformer_forward.11} parent=0 // pred_region
    _
  $region21: #{transformer_forward.11} parent=0 // pred_fallthru
    _
  // Predicated region
  $region22: #{transformer_forward.11} parent=0 // pred_check
    _
  $region23: #{transformer_forward.11} parent=0 // pred_check_branch
    %23 = sbr.rel (0) target = $region25
  $region24: #{transformer_forward.11} parent=0 // pred_region
    _
  $region25: #{transformer_forward.11} parent=0 // pred_fallthru
    _
  // Predicated region
  $region26: #{transformer_forward.11} parent=0 // pred_check
    _
  $region27: #{transformer_forward.11} parent=0 // pred_check_branch
    %25 = sbr.rel (0) target = $region29
  $region28: #{transformer_forward.11} parent=0 // pred_region
    _
  $region29: #{transformer_forward.11} parent=0 // pred_fallthru
    _
  %v27 = vld [vmem:[%s0] sm:$0xff]
  %v28 = vld [vmem:[%s0 + $0x8] sm:$0xff]
  %v29 = vld [vmem:[%s0 + $0x10] sm:$0xff]
  %v30 = vld [vmem:[%s0 + $0x18] sm:$0xff]
  %v31 = vld [vmem:[%s0 + $0x20] sm:$0xff]
  %v32 = vld [vmem:[%s0 + $0x28] sm:$0xff]
  %v33 = vld [vmem:[%s1] sm:$0xf]
  %v34 = vld [vmem:[%s1 + $0x4] sm:$0xf]
  %v35 = vld [vmem:[%s1 + $0x8] sm:$0xf]
  %v36 = vld [vmem:[%s1 + $0xc] sm:$0xf]
  %v37 = vld [vmem:[%s1 + $0x10] sm:$0xf]
  %v38 = vld [vmem:[%s1 + $0x14] sm:$0xf]
  %v39 = vld [vmem:[%s2] sm:$0x1]
  %v40 = vld [vmem:[%s2 + $0x1] sm:$0x1]
  %v41 = vld [vmem:[%s2 + $0x2] sm:$0x1]
  %v42 = vld [vmem:[%s2 + $0x3] sm:$0x1]
  %v43 = vld [vmem:[%s3] sm:$0xf]
  %v44 = vld [vmem:[%s3 + $0x4] sm:$0xf]
  %v45 = vld [vmem:[%s3 + $0x8] sm:$0xf]
  %v46 = vld [vmem:[%s3 + $0xc] sm:$0xf]
  %v47 = vperm.slane %v39, 0
  %v54 = vunpack.c.l.b16 %v33
  %v55 = vunpack.c.l.b16 %v34
  %v56 = vunpack.c.l.b16 %v35
  %v57 = vunpack.c.l.b16 %v36
  %v58 = vunpack.c.l.b16 %v37
  %v59 = vunpack.c.l.b16 %v38
  %v60 = vpack.c.b16 %v55, %v54
  %v61 = vpack.c.b16 %v57, %v56
  %v62 = vpack.c.b16 %v59, %v58
  %v67 = vunpack.c.l.b16 %v43
  %v68 = vunpack.c.l.b16 %v44
  %v69 = vunpack.c.l.b16 %v45
  %v70 = vunpack.c.l.b16 %v46
  %v71 = vpack.c.b16 %v68, %v67
  %v72 = vpack.c.b16 %v70, %v69
  %vm75 = vcmask 261120
  %v77 = vsel %vm75, %v60, 0
  %v80 = vsel %vm75, %v61, 0
  %v83 = vsel %vm75, %v62, 0
  %85 = vmatpush.bf16.msra.mxu0 0
  %86 = vmatpush.bf16.msra.mxu0 0
  %87 = vmatpush.bf16.msra.mxu0 0
  %88 = vmatpush.bf16.msra.mxu0 0
  %89 = vmatpush.bf16.msra.mxu0 0
  %90 = vmatpush.bf16.msra.mxu0 0
  %91 = vmatpush.bf16.msra.mxu0 %v72
  %92 = vmatpush.bf16.msra.mxu0 %v71
  %93 = vmatmul.bf16.gmra.mxu0 %v77
  %v94 = vpop.f32.mrf.mxu0
  %v95 = vadd.f32 %v47, %v94
  %v96 = vpop.f32.mrf.mxu0
  %v97 = vadd.f32 %v47, %v96
  %98 = vmatmul.bf16.gmra.mxu0 %v80
  %v99 = vpop.f32.mrf.mxu0
  %v100 = vadd.f32 %v47, %v99
  %v101 = vpop.f32.mrf.mxu0
  %v102 = vadd.f32 %v47, %v101
  %103 = vmatmul.bf16.gmra.mxu0 %v83
  %v104 = vpop.f32.mrf.mxu0
  %v105 = vadd.f32 %v47, %v104
  %v106 = vpop.f32.mrf.mxu0
  %v107 = vadd.f32 %v47, %v106
  %108 = vdwg.mxu0
  %v109 = vadd.f32 %v27, %v95
  %v110 = vadd.f32 %v28, %v97
  %v111 = vadd.f32 %v29, %v100
  %v112 = vadd.f32 %v30, %v102
  %v113 = vadd.f32 %v31, %v105
  %v114 = vadd.f32 %v32, %v107
  %v115 = vsel %vm75, %v109, 0.0
  %116 = vadd.xlane.f32.xlu0 %v115
  %v117 = vpop.xlane.xlu0 %116
  %v118 = vsel %vm75, %v110, 0.0
  %119 = vadd.xlane.f32.xlu0 %v118
  %v120 = vpop.xlane.xlu0 %119
  %v121 = vsel %vm75, %v111, 0.0
  %122 = vadd.xlane.f32.xlu0 %v121
  %v123 = vpop.xlane.xlu0 %122
  %v124 = vsel %vm75, %v112, 0.0
  %125 = vadd.xlane.f32.xlu0 %v124
  %v126 = vpop.xlane.xlu0 %125
  %v127 = vsel %vm75, %v113, 0.0
  %128 = vadd.xlane.f32.xlu0 %v127
  %v129 = vpop.xlane.xlu0 %128
  %v130 = vsel %vm75, %v114, 0.0
  %131 = vadd.xlane.f32.xlu0 %v130
  %v132 = vpop.xlane.xlu0 %131
  %v133 = vrcp.pop 32.0
  %v134 = vmul.f32 32.0, %v133
  %v135 = vsub.f32 1.0, %v134
  %v136 = vmul.f32 %v133, %v135
  %v137 = vadd.f32 %v133, %v136
  %vm138 = vweird.f32 %v133
  %v139 = vsel %vm138, %v133, %v137
  %v140 = vmul.f32 %v117, %v139
  %v141 = vmul.f32 %v120, %v139
  %v142 = vmul.f32 %v123, %v139
  %v143 = vmul.f32 %v126, %v139
  %v144 = vmul.f32 %v129, %v139
  %v145 = vmul.f32 %v132, %v139
  %v146 = vsub.f32 %v109, %v140
  %v147 = vsub.f32 %v110, %v141
  %v148 = vsub.f32 %v111, %v142
  %v149 = vsub.f32 %v112, %v143
  %v150 = vsub.f32 %v113, %v144
  %v151 = vsub.f32 %v114, %v145
  %v152 = vmul.f32 %v146, %v146
  %v153 = vmul.f32 %v147, %v147
  %v154 = vmul.f32 %v148, %v148
  %v155 = vmul.f32 %v149, %v149
  %v156 = vmul.f32 %v150, %v150
  %v157 = vmul.f32 %v151, %v151
  %v158 = vsel %vm75, %v152, 0.0
  %159 = vadd.xlane.f32.xlu0 %v158
  %v160 = vpop.xlane.xlu0 %159
  %v161 = vsel %vm75, %v153, 0.0
  %162 = vadd.xlane.f32.xlu0 %v161
  %v163 = vpop.xlane.xlu0 %162
  %v164 = vsel %vm75, %v154, 0.0
  %165 = vadd.xlane.f32.xlu0 %v164
  %v166 = vpop.xlane.xlu0 %165
  %v167 = vsel %vm75, %v155, 0.0
  %168 = vadd.xlane.f32.xlu0 %v167
  %v169 = vpop.xlane.xlu0 %168
  %v170 = vsel %vm75, %v156, 0.0
  %171 = vadd.xlane.f32.xlu0 %v170
  %v172 = vpop.xlane.xlu0 %171
  %v173 = vsel %vm75, %v157, 0.0
  %174 = vadd.xlane.f32.xlu0 %v173
  %v175 = vpop.xlane.xlu0 %174
  %v176 = vmul.f32 %v160, %v139
  %v177 = vmul.f32 %v163, %v139
  %v178 = vmul.f32 %v166, %v139
  %v179 = vmul.f32 %v169, %v139
  %v180 = vmul.f32 %v172, %v139
  %v181 = vmul.f32 %v175, %v139
  %v182 = vadd.f32 %v176, 1e-05
  %v183 = vadd.f32 %v177, 1e-05
  %v184 = vadd.f32 %v178, 1e-05
  %v185 = vadd.f32 %v179, 1e-05
  %v186 = vadd.f32 %v180, 1e-05
  %v187 = vadd.f32 %v181, 1e-05
  %v188 = vrsqrt.pop %v182
  %v189 = vmul.f32 %v188, %v182
  %v190 = vmul.f32 %v189, %v188
  %v191 = vmul.f32 0.5, %v190
  %v192 = vsub.f32 1.5, %v191
  %v193 = vmul.f32 %v188, %v192
  %vm194 = vweird.f32 %v182
  %vm195 = vweird.f32 %v188
  %vm196 = vmor %vm194, %vm195
  %v197 = vsel %vm196, %v188, %v193
  %v198 = vrsqrt.pop %v183
  %v199 = vmul.f32 %v198, %v183
  %v200 = vmul.f32 %v199, %v198
  %v201 = vmul.f32 0.5, %v200
  %v202 = vsub.f32 1.5, %v201
  %v203 = vmul.f32 %v198, %v202
  %vm204 = vweird.f32 %v183
  %vm205 = vweird.f32 %v198
  %vm206 = vmor %vm204, %vm205
  %v207 = vsel %vm206, %v198, %v203
  %v208 = vrsqrt.pop %v184
  %v209 = vmul.f32 %v208, %v184
  %v210 = vmul.f32 %v209, %v208
  %v211 = vmul.f32 0.5, %v210
  %v212 = vsub.f32 1.5, %v211
  %v213 = vmul.f32 %v208, %v212
  %vm214 = vweird.f32 %v184
  %vm215 = vweird.f32 %v208
  %vm216 = vmor %vm214, %vm215
  %v217 = vsel %vm216, %v208, %v213
  %v218 = vrsqrt.pop %v185
  %v219 = vmul.f32 %v218, %v185
  %v220 = vmul.f32 %v219, %v218
  %v221 = vmul.f32 0.5, %v220
  %v222 = vsub.f32 1.5, %v221
  %v223 = vmul.f32 %v218, %v222
  %vm224 = vweird.f32 %v185
  %vm225 = vweird.f32 %v218
  %vm226 = vmor %vm224, %vm225
  %v227 = vsel %vm226, %v218, %v223
  %v228 = vrsqrt.pop %v186
  %v229 = vmul.f32 %v228, %v186
  %v230 = vmul.f32 %v229, %v228
  %v231 = vmul.f32 0.5, %v230
  %v232 = vsub.f32 1.5, %v231
  %v233 = vmul.f32 %v228, %v232
  %vm234 = vweird.f32 %v186
  %vm235 = vweird.f32 %v228
  %vm236 = vmor %vm234, %vm235
  %v237 = vsel %vm236, %v228, %v233
  %v238 = vrsqrt.pop %v187
  %v239 = vmul.f32 %v238, %v187
  %v240 = vmul.f32 %v239, %v238
  %v241 = vmul.f32 0.5, %v240
  %v242 = vsub.f32 1.5, %v241
  %v243 = vmul.f32 %v238, %v242
  %vm244 = vweird.f32 %v187
  %vm245 = vweird.f32 %v238
  %vm246 = vmor %vm244, %vm245
  %v247 = vsel %vm246, %v238, %v243
  %v248 = vmul.f32 %v146, %v197
  %v249 = vmul.f32 %v147, %v207
  %v250 = vmul.f32 %v148, %v217
  %v251 = vmul.f32 %v149, %v227
  %v252 = vmul.f32 %v150, %v237
  %v253 = vmul.f32 %v151, %v247
  %v254 = vperm.slane %v40, 0
  %v255 = vmul.f32 %v248, %v254
  %v256 = vmul.f32 %v249, %v254
  %v257 = vmul.f32 %v250, %v254
  %v258 = vmul.f32 %v251, %v254
  %v259 = vmul.f32 %v252, %v254
  %v260 = vmul.f32 %v253, %v254
  %v261 = vperm.slane %v41, 0
  %v262 = vadd.f32 %v255, %v261
  %v263 = vadd.f32 %v256, %v261
  %v264 = vadd.f32 %v257, %v261
  %v265 = vadd.f32 %v258, %v261
  %v266 = vadd.f32 %v259, %v261
  %v267 = vadd.f32 %v260, %v261
  %v268 = vpack.c.bf16 %v263, %v262
  %v269 = vpack.c.bf16 %v265, %v264
  %v270 = vpack.c.bf16 %v267, %v266
  %v271 = vld [vmem:[%s4] sm:$0xf]
  %v272 = vld [vmem:[%s4 + $0x4] sm:$0xf]
  %v273 = vld [vmem:[%s4 + $0x8] sm:$0xf]
  %v274 = vld [vmem:[%s4 + $0xc] sm:$0xf]
  %v275 = vld [vmem:[%s5] sm:$0x1]
  %v277 = vperm.slane %v275, 0
  %v283 = vunpack.c.l.b16 %v271
  %v284 = vunpack.c.l.b16 %v272
  %v285 = vunpack.c.l.b16 %v273
  %v286 = vunpack.c.l.b16 %v274
  %v287 = vpack.c.b16 %v284, %v283
  %v288 = vpack.c.b16 %v286, %v285
  %v292 = vsel %vm75, %v268, 0
  %v295 = vsel %vm75, %v269, 0
  %v298 = vsel %vm75, %v270, 0
  %300 = vmatpush.bf16.msra.mxu0 0
  %301 = vmatpush.bf16.msra.mxu0 0
  %302 = vmatpush.bf16.msra.mxu0 0
  %303 = vmatpush.bf16.msra.mxu0 0
  %304 = vmatpush.bf16.msra.mxu0 0
  %305 = vmatpush.bf16.msra.mxu0 0
  %306 = vmatpush.bf16.msra.mxu0 %v288
  %307 = vmatpush.bf16.msra.mxu0 %v287
  %308 = vmatmul.bf16.gmra.mxu0 %v292
  %v309 = vpop.f32.mrf.mxu0
  %v310 = vadd.f32 %v277, %v309
  %v311 = vpop.f32.mrf.mxu0
  %v312 = vadd.f32 %v277, %v311
  %313 = vmatmul.bf16.gmra.mxu0 %v295
  %v314 = vpop.f32.mrf.mxu0
  %v315 = vadd.f32 %v277, %v314
  %v316 = vpop.f32.mrf.mxu0
  %v317 = vadd.f32 %v277, %v316
  %318 = vmatmul.bf16.gmra.mxu0 %v298
  %v319 = vpop.f32.mrf.mxu0
  %v320 = vadd.f32 %v277, %v319
  %v321 = vpop.f32.mrf.mxu0
  %v322 = vadd.f32 %v277, %v321
  %323 = vdwg.mxu0
  %v324 = vmul.f32 %v310, %v310
  %v325 = vmul.f32 %v312, %v312
  %v326 = vmul.f32 %v315, %v315
  %v327 = vmul.f32 %v317, %v317
  %v328 = vmul.f32 %v320, %v320
  %v329 = vmul.f32 %v322, %v322
  %v330 = vmul.f32 %v310, %v324
  %v331 = vmul.f32 %v312, %v325
  %v332 = vmul.f32 %v315, %v326
  %v333 = vmul.f32 %v317, %v327
  %v334 = vmul.f32 %v320, %v328
  %v335 = vmul.f32 %v322, %v329
  %v336 = vmul.f32 %v330, 0.044715
  %v337 = vmul.f32 %v331, 0.044715
  %v338 = vmul.f32 %v332, 0.044715
  %v339 = vmul.f32 %v333, 0.044715
  %v340 = vmul.f32 %v334, 0.044715
  %v341 = vmul.f32 %v335, 0.044715
  %v342 = vadd.f32 %v310, %v336
  %v343 = vadd.f32 %v312, %v337
  %v344 = vadd.f32 %v315, %v338
  %v345 = vadd.f32 %v317, %v339
  %v346 = vadd.f32 %v320, %v340
  %v347 = vadd.f32 %v322, %v341
  %v348 = vmul.f32 %v342, 0.7978846
  %v349 = vmul.f32 %v343, 0.7978846
  %v350 = vmul.f32 %v344, 0.7978846
  %v351 = vmul.f32 %v345, 0.7978846
  %v352 = vmul.f32 %v346, 0.7978846
  %v353 = vmul.f32 %v347, 0.7978846
  %v354 = vtanh.pop %v348
  %v355 = vtanh.pop %v349
  %v356 = vtanh.pop %v350
  %v357 = vtanh.pop %v351
  %v358 = vtanh.pop %v352
  %v359 = vtanh.pop %v353
  %v360 = vadd.f32 %v354, 1.0
  %v361 = vadd.f32 %v355, 1.0
  %v362 = vadd.f32 %v356, 1.0
  %v363 = vadd.f32 %v357, 1.0
  %v364 = vadd.f32 %v358, 1.0
  %v365 = vadd.f32 %v359, 1.0
  %v366 = vmul.f32 %v360, 0.5
  %v367 = vmul.f32 %v361, 0.5
  %v368 = vmul.f32 %v362, 0.5
  %v369 = vmul.f32 %v363, 0.5
  %v370 = vmul.f32 %v364, 0.5
  %v371 = vmul.f32 %v365, 0.5
  %v372 = vmul.f32 %v310, %v366
  %v373 = vmul.f32 %v312, %v367
  %v374 = vmul.f32 %v315, %v368
  %v375 = vmul.f32 %v317, %v369
  %v376 = vmul.f32 %v320, %v370
  %v377 = vmul.f32 %v322, %v371
  %v378 = vpack.c.bf16 %v373, %v372
  %v379 = vpack.c.bf16 %v375, %v374
  %v380 = vpack.c.bf16 %v377, %v376
  %v381 = vld [vmem:[%s6] sm:$0xf]
  %v382 = vld [vmem:[%s6 + $0x4] sm:$0xf]
  %v383 = vld [vmem:[%s6 + $0x8] sm:$0xf]
  %v384 = vld [vmem:[%s6 + $0xc] sm:$0xf]
  %v385 = vld [vmem:[%s6 + $0x10] sm:$0xf]
  %v386 = vld [vmem:[%s6 + $0x14] sm:$0xf]
  %v387 = vld [vmem:[%s6 + $0x18] sm:$0xf]
  %v388 = vld [vmem:[%s6 + $0x1c] sm:$0xf]
  %v389 = vperm.slane %v42, 0
  %v398 = vunpack.c.l.b16 %v381
  %v399 = vunpack.c.l.b16 %v382
  %v400 = vunpack.c.l.b16 %v383
  %v401 = vunpack.c.l.b16 %v384
  %v402 = vunpack.c.l.b16 %v385
  %v403 = vunpack.c.l.b16 %v386
  %v404 = vunpack.c.l.b16 %v387
  %v405 = vunpack.c.l.b16 %v388
  %v406 = vpack.c.b16 %v399, %v398
  %v407 = vpack.c.b16 %v401, %v400
  %v408 = vpack.c.b16 %v403, %v402
  %v409 = vpack.c.b16 %v405, %v404
  %vm414 = vcmask 523264
  %v416 = vsel %vm414, %v378, 0
  %v419 = vsel %vm414, %v379, 0
  %v422 = vsel %vm414, %v380, 0
  %424 = vmatpush.bf16.msra.mxu0 0
  %425 = vmatpush.bf16.msra.mxu0 0
  %426 = vmatpush.bf16.msra.mxu0 0
  %427 = vmatpush.bf16.msra.mxu0 0
  %428 = vmatpush.bf16.msra.mxu0 %v409
  %429 = vmatpush.bf16.msra.mxu0 %v408
  %430 = vmatpush.bf16.msra.mxu0 %v407
  %431 = vmatpush.bf16.msra.mxu0 %v406
  %432 = vmatmul.bf16.gmra.mxu0 %v416
  %v433 = vpop.f32.mrf.mxu0
  %v434 = vadd.f32 %v389, %v433
  %v435 = vpop.f32.mrf.mxu0
  %v436 = vadd.f32 %v389, %v435
  %437 = vmatmul.bf16.gmra.mxu0 %v419
  %v438 = vpop.f32.mrf.mxu0
  %v439 = vadd.f32 %v389, %v438
  %v440 = vpop.f32.mrf.mxu0
  %v441 = vadd.f32 %v389, %v440
  %442 = vmatmul.bf16.gmra.mxu0 %v422
  %v443 = vpop.f32.mrf.mxu0
  %v444 = vadd.f32 %v389, %v443
  %v445 = vpop.f32.mrf.mxu0
  %v446 = vadd.f32 %v389, %v445
  %447 = vdwg.mxu0
  %v448 = vadd.f32 %v109, %v434
  %v449 = vadd.f32 %v110, %v436
  %v450 = vadd.f32 %v111, %v439
  %v451 = vadd.f32 %v112, %v441
  %v452 = vadd.f32 %v113, %v444
  %v453 = vadd.f32 %v114, %v446
  %454 = vst.msk [vmem:[%s7] sm:$0xff] %vm75, %v448
  %455 = vst.msk [vmem:[%s7 + $0x8] sm:$0xff] %vm75, %v449
  %456 = vst.msk [vmem:[%s7 + $0x10] sm:$0xff] %vm75, %v450
  %457 = vst.msk [vmem:[%s7 + $0x18] sm:$0xff] %vm75, %v451
  %458 = vst.msk [vmem:[%s7 + $0x20] sm:$0xff] %vm75, %v452
  %459 = vst.msk [vmem:[%s7 + $0x28] sm:$0xff] %vm75, %v453
  // Predicated region
  $region30: #{transformer_forward.11} parent=0 // pred_check
    _
  $region31: #{transformer_forward.11} parent=0 // pred_check_branch
    %461 = sbr.rel (0) target = $region33
  $region32: #{transformer_forward.11} parent=0 // pred_region
    _
  $region33: #{transformer_forward.11} parent=0 // pred_fallthru
    _
  // Predicated region
  $region34: #{transformer_forward.11} parent=0 // pred_check
    _
  $region35: #{transformer_forward.11} parent=0 // pred_check_branch
    %463 = sbr.rel (0) target = $region37
  $region36: #{transformer_forward.11} parent=0 // pred_region
    _
  $region37: #{transformer_forward.11} parent=0 // pred_fallthru
    _

// kernel: transformer_forward.15
$region0: #{transformer_forward.15}
  #allocation0 [shape = 'u32[]', space=smem, size = 0x4, offset = 0x4, fixed_abs, tag = 'smem constant byte address 0x4 - core index']
  #allocation1 [shape = 'u32[72,128]{1,0:T(1,128)}', space=vmem, size = 0x9000, scoped, tag = 'internal scratch']
  %s0 = inlined_call_operand.vmem [shape: f32[2,32], index: 0, kind: input, shape index: {}]
  %s1 = inlined_call_operand.vmem [shape: f32[1,32], index: 1, kind: input, shape index: {}]
  %s2 = inlined_call_operand.vmem [shape: f32[1,32], index: 2, kind: input, shape index: {}]
  %s3 = inlined_call_operand.vmem [shape: bf16[32,10], index: 3, kind: input, shape index: {}]
  %s4 = inlined_call_operand.vmem [shape: f32[1,10], index: 4, kind: input, shape index: {}]
  %s5 = inlined_call_operand.hbm [shape: f32[2,10], index: 5, kind: output, shape index: {}]
  %s6 = sld [smem:[#allocation0]]
  $region30: #{transformer_forward.15} parent=0
    _
  %s8 = ssub.s32 1, %s6
  %s9 = scalar_select 0, %s8, %s6
  $region1: #{transformer_forward.15} parent=0
    #allocation2 [shape = 'u8[1024]{0}', space=vmem, size = 0x400, scoped, tag = 'output window, operand 0, single buffered']
    #allocation3 [shape = 's32[1]{0}', space=sflag, size = 0x4, scoped, tag = 'scoped memory for transformer_forward.15']
    %10 = vsyncpa [#allocation3], 0
    // Predicated region
    $region2: #{transformer_forward.15} parent=1 // pred_check
      _
    $region3: #{transformer_forward.15} parent=1 // pred_check_branch
      %12 = sbr.rel (0) target = $region5
    $region4: #{transformer_forward.15} parent=1 // pred_region
      _
    $region5: #{transformer_forward.15} parent=1 // pred_fallthru
      _
    // Predicated region
    $region6: #{transformer_forward.15} parent=1 // pred_check
      _
    $region7: #{transformer_forward.15} parent=1 // pred_check_branch
      %14 = sbr.rel (0) target = $region9
    $region8: #{transformer_forward.15} parent=1 // pred_region
      _
    $region9: #{transformer_forward.15} parent=1 // pred_fallthru
      _
    // Predicated region
    $region10: #{transformer_forward.15} parent=1 // pred_check
      _
    $region11: #{transformer_forward.15} parent=1 // pred_check_branch
      %16 = sbr.rel (0) target = $region13
    $region12: #{transformer_forward.15} parent=1 // pred_region
      _
    $region13: #{transformer_forward.15} parent=1 // pred_fallthru
      _
    // Predicated region
    $region14: #{transformer_forward.15} parent=1 // pred_check
      _
    $region15: #{transformer_forward.15} parent=1 // pred_check_branch
      %18 = sbr.rel (0) target = $region17
    $region16: #{transformer_forward.15} parent=1 // pred_region
      _
    $region17: #{transformer_forward.15} parent=1 // pred_fallthru
      _
    // Predicated region
    $region18: #{transformer_forward.15} parent=1 // pred_check
      _
    $region19: #{transformer_forward.15} parent=1 // pred_check_branch
      %20 = sbr.rel (0) target = $region21
    $region20: #{transformer_forward.15} parent=1 // pred_region
      _
    $region21: #{transformer_forward.15} parent=1 // pred_fallthru
      _
    %v22 = vld [vmem:[%s0] sm:$0x3]
    %v23 = vld [vmem:[%s1] sm:$0x1]
    %v24 = vld [vmem:[%s2] sm:$0x1]
    %vm25 = vcmask 254976
    %v26 = vsel %vm25, %v22, 0.0
    %27 = vadd.xlane.f32.xlu0 %v26
    %v28 = vpop.xlane.xlu0 %27
    %v29 = vrcp.pop 32.0
    %v30 = vmul.f32 32.0, %v29
    %v31 = vsub.f32 1.0, %v30
    %v32 = vmul.f32 %v29, %v31
    %v33 = vadd.f32 %v29, %v32
    %vm34 = vweird.f32 %v29
    %v35 = vsel %vm34, %v29, %v33
    %v36 = vmul.f32 %v28, %v35
    %v37 = vsub.f32 %v22, %v36
    %v38 = vmul.f32 %v37, %v37
    %v39 = vsel %vm25, %v38, 0.0
    %40 = vadd.xlane.f32.xlu0 %v39
    %v41 = vpop.xlane.xlu0 %40
    %v42 = vmul.f32 %v41, %v35
    %v43 = vadd.f32 %v42, 1e-06
    %v44 = vrsqrt.pop %v43
    %v45 = vmul.f32 %v44, %v43
    %v46 = vmul.f32 %v45, %v44
    %v47 = vmul.f32 0.5, %v46
    %v48 = vsub.f32 1.5, %v47
    %v49 = vmul.f32 %v44, %v48
    %vm50 = vweird.f32 %v43
    %vm51 = vweird.f32 %v44
    %vm52 = vmor %vm50, %vm51
    %v53 = vsel %vm52, %v44, %v49
    %v54 = vmul.f32 %v37, %v53
    %v56 = vperm.slane %v23, 0
    %v58 = vmul.f32 %v54, %v56
    %v60 = vperm.slane %v24, 0
    %v62 = vadd.f32 %v58, %v60
    %v63 = vpack.c.bf16 %v62, %v62
    %v64 = vld [vmem:[%s3] sm:$0xf]
    %v65 = vld [vmem:[%s3 + $0x4] sm:$0xf]
    %v66 = vld [vmem:[%s3 + $0x8] sm:$0xf]
    %v67 = vld [vmem:[%s3 + $0xc] sm:$0xf]
    %v68 = vld [vmem:[%s4] sm:$0x1]
    %v70 = vperm.slane %v68, 0
    %v76 = vunpack.c.l.b16 %v64
    %v77 = vunpack.c.l.b16 %v65
    %v78 = vunpack.c.l.b16 %v66
    %v79 = vunpack.c.l.b16 %v67
    %v80 = vpack.c.b16 %v77, %v76
    %v81 = vpack.c.b16 %v79, %v78
    %vm84 = vcmask 261120
    %v86 = vsel %vm84, %v63, 0
    %88 = vmatpush.bf16.msra.mxu0 0
    %89 = vmatpush.bf16.msra.mxu0 0
    %90 = vmatpush.bf16.msra.mxu0 0
    %91 = vmatpush.bf16.msra.mxu0 0
    %92 = vmatpush.bf16.msra.mxu0 0
    %93 = vmatpush.bf16.msra.mxu0 0
    %94 = vmatpush.bf16.msra.mxu0 %v81
    %95 = vmatpush.bf16.msra.mxu0 %v80
    %96 = vmatmul.bf16.gmra.mxu0 %v86
    %v97 = vpop.f32.mrf.mxu0
    %v98 = vadd.f32 %v70, %v97
    %v99 = vpop.f32.mrf.mxu0
    %100 = vdwg.mxu0
    %vm101 = vcmask 74752
    %102 = vst.msk [vmem:[#allocation2] sm:$0x3] %vm101, %v98
    // Predicated region
    $region22: #{transformer_forward.15} parent=1 // pred_check
      _
    $region23: #{transformer_forward.15} parent=1 // pred_check_branch
      %104 = sbr.rel (0) target = $region25
    $region24: #{transformer_forward.15} parent=1 // pred_region
      %106 = vsyncadd [#allocation3], 0
      %s108 = sshll.u32 [#allocation2], 4
      %s109 = int_to_ptr.vmem [resolvable:$true] %s108
      %s110 = sshll.u32 %s5, 4
      %s111 = int_to_ptr.hbm [resolvable:$true] %s110
      %113 = dma.vmem_to_hbm [thread:$0]  %s109, 32, %s111, [#allocation3]
    $region25: #{transformer_forward.15} parent=1 // pred_fallthru
      _
    // Predicated region
    $region26: #{transformer_forward.15} parent=1 // pred_check
      _
    $region27: #{transformer_forward.15} parent=1 // pred_check_branch
      %115 = sbr.rel (0) target = $region29
    $region28: #{transformer_forward.15} parent=1 // pred_region
      %117 = dma.done [#allocation3], 32
    $region29: #{transformer_forward.15} parent=1 // pred_fallthru
      _
    %118 = vsyncpa [#allocation3], 1

</llo_original>
